<compile_context>
chip_gen: v7x
topology: tpu7x:2x2x1
jax: 0.10.0
libtpu: 0.0.40
codegen_flags: <defaults>
</compile_context>

<pallas_src>
from functools import partial

import jax
import jax.numpy as jnp
from jax.experimental import pallas as pl
from jax.experimental.pallas import tpu as pltpu


def _round_up(x, m):
    return ((x + m - 1) // m) * m


def _gru_encoder_kernel(x_ref, wih_ref, whh_ref, bih_ref, bhh_ref, h_out_ref,
                        xsc_ref):
    """Fused GRU encoder: input projection + full time recurrence, one call.

    x_ref  : (B, T, F)   raw batch-first input
    wih_ref: (Kp, Gp)    W_ih^T, rows 0:F real, gate-packed columns 0:3H
    whh_ref: (Gp, Gp)    W_hh^T, rows 0:H real, gate-packed columns 0:3H
    bih_ref: (1, Gp)     b_ih gate-packed
    bhh_ref: (1, Gp)     b_hh gate-packed
    h_out  : (1, B, H)   final hidden state (PyTorch h_n layout)
    xsc_ref: (T, Kp)     scratch: lane-padded time-rows of one batch element
    """
    B, T, F = x_ref.shape
    Kp, Gp = wih_ref.shape
    H = h_out_ref.shape[2]
    f32 = jnp.float32

    bih = bih_ref[...]        # (1, Gp)
    bhh = bhh_ref[...]        # (1, Gp)  -- single vreg, no per-step broadcast

    # zero once; only lanes [:F] are ever rewritten below
    xsc_ref[...] = jnp.zeros_like(xsc_ref)

    h_finals = []
    for b in range(B):                       # B independent recurrences (B=2)
        # ---- fused input projection for batch b: gi = x_b @ W_ih^T + b_ih ----
        xsc_ref[:, :F] = x_ref[b].astype(f32)                 # (T, F) -> lanes :F
        gi = jnp.dot(xsc_ref[...], wih_ref[...],
                     preferred_element_type=f32) + bih        # (T, Gp), packed gates

        # ---- serial GRU recurrence (fully unrolled, T is small/static) ----
        h = jnp.zeros((1, Gp), f32)          # lanes 0:H = hidden state, rest ignored
        for t in range(T):
            gi_t = gi[t:t + 1, :]                                         # (1, Gp)
            # W_hh re-read from VMEM each step (loads are free; no 16-vreg hoist)
            gh = jnp.dot(h, whh_ref[...],
                         preferred_element_type=f32) + bhh               # (1, Gp)
            # r/z gates: lanes [0:H] = r, [H:2H] = z
            rz = jax.nn.sigmoid(gi_t + gh)
            # move r onto the n-gate lanes [2H:3H]
            r_at_n = pltpu.roll(rz, 2 * H, axis=1)
            # n gate (valid at lanes [2H:3H]): tanh(i_n + b_in + r*(h_n + b_hn))
            n = jnp.tanh(gi_t + r_at_n * gh)
            # bring n and z back onto the hidden lanes [0:H]
            n0 = pltpu.roll(n, Gp - 2 * H, axis=1)
            z0 = pltpu.roll(rz, Gp - H, axis=1)
            # h_new = (1-z)*n + z*h  ==  n + z*(h - n)
            h = n0 + z0 * (h - n0)
        h_finals.append(h[:, :H])            # (1, H) true hidden state

    h_out_ref[...] = jnp.concatenate(h_finals, axis=0).reshape(1, B, H)


def prepare_encoder_params(w_ih, w_hh, b_ih, b_hh):
    """One-time packing of PyTorch-layout GRU weights (call once at init,
    outside the per-call jitted forward)."""
    H3, F = w_ih.shape
    H = H3 // 3
    Gp = _round_up(3 * H, 128)     # packed gate width (one lane tile for H=32)
    Kp = _round_up(F, 128)         # lane-padded contracting dim for x @ W_ih^T
    f32 = jnp.float32

    wih_p = jnp.zeros((Kp, Gp), f32).at[:F, :H3].set(jnp.asarray(w_ih, f32).T)
    whh_p = jnp.zeros((Gp, Gp), f32).at[:H, :H3].set(jnp.asarray(w_hh, f32).T)
    bih_p = jnp.zeros((1, Gp), f32).at[0, :H3].set(jnp.asarray(b_ih, f32))
    bhh_p = jnp.zeros((1, Gp), f32).at[0, :H3].set(jnp.asarray(b_hh, f32))
    return wih_p, whh_p, bih_p, bhh_p


@partial(jax.jit, static_argnames=("latent_dim",))
def encoder_forward(x, wih_p, whh_p, bih_p, bhh_p, *, latent_dim):
    """GRU encoder forward.  x: (B, T, F) batch-first.  Returns h_n: (1, B, H).

    The wrapper is a single pallas_call: no per-call transposes, pads, or
    weight reshapes, and no gi HBM round-trip."""
    B, T, F = x.shape
    Kp, Gp = wih_p.shape
    H = latent_dim

    return pl.pallas_call(
        _gru_encoder_kernel,
        out_shape=jax.ShapeDtypeStruct((1, B, H), jnp.float32),
        grid_spec=pltpu.PrefetchScalarGridSpec(
            num_scalar_prefetch=0,
            grid=(1,),                       # whole recurrence in one invocation
            in_specs=[
                pl.BlockSpec((B, T, F), lambda i: (0, 0, 0)),   # raw x
                pl.BlockSpec((Kp, Gp), lambda i: (0, 0)),       # packed W_ih^T
                pl.BlockSpec((Gp, Gp), lambda i: (0, 0)),       # packed W_hh^T
                pl.BlockSpec((1, Gp), lambda i: (0, 0)),        # packed b_ih
                pl.BlockSpec((1, Gp), lambda i: (0, 0)),        # packed b_hh
            ],
            out_specs=pl.BlockSpec((1, B, H), lambda i: (0, 0, 0)),
            scratch_shapes=[pltpu.VMEM((T, Kp), jnp.float32)],
        ),
        compiler_params=pltpu.CompilerParams(
            dimension_semantics=("arbitrary",),
        ),
    )(x, wih_p, whh_p, bih_p, bhh_p)


def _gru_reference(x_btf, w_ih, w_hh, b_ih, b_hh):
    """Pure-JAX reference (PyTorch nn.GRU semantics) for correctness check."""
    B, T, F = x_btf.shape
    H = w_hh.shape[1]

    def step(h, x_t):
        gi = x_t @ w_ih.T + b_ih
        gh = h @ w_hh.T + b_hh
        i_r, i_z, i_n = gi[:, :H], gi[:, H:2 * H], gi[:, 2 * H:]
        h_r, h_z, h_n = gh[:, :H], gh[:, H:2 * H], gh[:, 2 * H:]
        r = jax.nn.sigmoid(i_r + h_r)
        z = jax.nn.sigmoid(i_z + h_z)
        n = jnp.tanh(i_n + r * h_n)
        h_new = (1.0 - z) * n + z * h
        return h_new, None

    h0 = jnp.zeros((B, H), jnp.float32)
    h_final, _ = jax.lax.scan(step, h0, jnp.transpose(x_btf, (1, 0, 2)))
    return h_final[None]


if __name__ == "__main__":
    # Small shapes implied by the module: batch=2, seq=8, n_features=4, latent_dim=32
    B, T, F, H = 2, 8, 4, 32

    key = jax.random.PRNGKey(0)
    k_x, k_wi, k_wh, k_bi, k_bh = jax.random.split(key, 5)

    # PyTorch GRU init: uniform(-1/sqrt(H), 1/sqrt(H))
    bound = 1.0 / jnp.sqrt(jnp.float32(H))
    x = jax.random.normal(k_x, (B, T, F), dtype=jnp.float32)
    w_ih = jax.random.uniform(k_wi, (3 * H, F), jnp.float32, -bound, bound)
    w_hh = jax.random.uniform(k_wh, (3 * H, H), jnp.float32, -bound, bound)
    b_ih = jax.random.uniform(k_bi, (3 * H,), jnp.float32, -bound, bound)
    b_hh = jax.random.uniform(k_bh, (3 * H,), jnp.float32, -bound, bound)

    # One-time weight packing (hoisted out of the per-call forward).
    wih_p, whh_p, bih_p, bhh_p = prepare_encoder_params(w_ih, w_hh, b_ih, b_hh)

    h_n = encoder_forward(x, wih_p, whh_p, bih_p, bhh_p, latent_dim=H)
    h_n = jax.block_until_ready(h_n)

    h_ref = _gru_reference(x, w_ih, w_hh, b_ih, b_hh)
    assert h_n.shape == (1, B, H), h_n.shape
    assert jnp.allclose(h_n, h_ref, atol=1e-5, rtol=1e-5), "mismatch vs reference"

    print("KERNEL_OK")
</pallas_src>

<mosaic_0001>
module attributes {stable_mosaic.version = 11 : i64} {
  func.func @_gru_encoder_kernel(%arg0: i32, %arg1: memref<2x8x4xf32, #tpu.memory_space<vmem>>, %arg2: memref<128x128xf32, #tpu.memory_space<vmem>>, %arg3: memref<128x128xf32, #tpu.memory_space<vmem>>, %arg4: memref<1x128xf32, #tpu.memory_space<vmem>>, %arg5: memref<1x128xf32, #tpu.memory_space<vmem>>, %arg6: memref<1x2x32xf32, #tpu.memory_space<vmem>>, %arg7: memref<8x128xf32, #tpu.memory_space<vmem>>) attributes {dimension_semantics = [#tpu.dimension_semantics<arbitrary>], iteration_bounds = array<i64: 1>, scalar_prefetch = 0 : i64, scratch_operands = 1 : i64, tpu.core_type = #tpu.core_type<tc>, window_params = [{pipeline_mode = #tpu.pipeline_mode<synchronous>, transform_indices = @transform_0, window_bounds = array<i64: 2, 8, 4>}, {pipeline_mode = #tpu.pipeline_mode<synchronous>, transform_indices = @transform_1, window_bounds = array<i64: 128, 128>}, {pipeline_mode = #tpu.pipeline_mode<synchronous>, transform_indices = @transform_2, window_bounds = array<i64: 128, 128>}, {pipeline_mode = #tpu.pipeline_mode<synchronous>, transform_indices = @transform_3, window_bounds = array<i64: 1, 128>}, {pipeline_mode = #tpu.pipeline_mode<synchronous>, transform_indices = @transform_4, window_bounds = array<i64: 1, 128>}, {pipeline_mode = #tpu.pipeline_mode<synchronous>, transform_indices = @transform_5, window_bounds = array<i64: 1, 2, 32>}]} {
    %c0 = arith.constant 0 : index
    %c0_0 = arith.constant 0 : index
    %0 = vector.load %arg4[%c0, %c0_0] : memref<1x128xf32, #tpu.memory_space<vmem>>, vector<1x128xf32>
    %c0_1 = arith.constant 0 : index
    %c0_2 = arith.constant 0 : index
    %1 = vector.load %arg5[%c0_1, %c0_2] : memref<1x128xf32, #tpu.memory_space<vmem>>, vector<1x128xf32>
    %cst = arith.constant 0.000000e+00 : f32
    %2 = vector.broadcast %cst : f32 to vector<8x128xf32>
    %c0_3 = arith.constant 0 : index
    %c0_4 = arith.constant 0 : index
    %3 = vector.load %arg7[%c0_3, %c0_4] : memref<8x128xf32, #tpu.memory_space<vmem>>, vector<8x128xf32>
    tpu.vector_store %arg7[%c0_3, %c0_4], %2 {strides = array<i32>} : memref<8x128xf32, #tpu.memory_space<vmem>>, vector<8x128xf32>,
    %c0_5 = arith.constant 0 : index
    %c0_6 = arith.constant 0 : index
    %c0_7 = arith.constant 0 : index
    %4 = vector.load %arg1[%c0_5, %c0_6, %c0_7] : memref<2x8x4xf32, #tpu.memory_space<vmem>>, vector<1x8x4xf32>
    %5 = vector.shape_cast %4 : vector<1x8x4xf32> to vector<8x4xf32>
    %c0_8 = arith.constant 0 : index
    %c0_9 = arith.constant 0 : index
    %6 = vector.load %arg7[%c0_8, %c0_9] : memref<8x128xf32, #tpu.memory_space<vmem>>, vector<8x4xf32>
    tpu.vector_store %arg7[%c0_8, %c0_9], %5 {strides = array<i32>} : memref<8x128xf32, #tpu.memory_space<vmem>>, vector<8x4xf32>,
    %c0_10 = arith.constant 0 : index
    %c0_11 = arith.constant 0 : index
    %7 = vector.load %arg7[%c0_10, %c0_11] : memref<8x128xf32, #tpu.memory_space<vmem>>, vector<8x128xf32>
    %c0_12 = arith.constant 0 : index
    %c0_13 = arith.constant 0 : index
    %8 = vector.load %arg2[%c0_12, %c0_13] : memref<128x128xf32, #tpu.memory_space<vmem>>, vector<128x128xf32>
    %cst_14 = arith.constant dense<0.000000e+00> : vector<8x128xf32>
    %9 = tpu.matmul %7, %8, %cst_14 {dimension_numbers = #tpu.dot_dimension_numbers<[1], [0], [0], [1], [0, 0, 1, 1], [], []>} : vector<8x128xf32>, vector<128x128xf32>, vector<8x128xf32> -> vector<8x128xf32>
    %10 = vector.broadcast %0 : vector<1x128xf32> to vector<8x128xf32>
    %11 = arith.addf %9, %10 : vector<8x128xf32>
    %cst_15 = arith.constant 0.000000e+00 : f32
    %12 = vector.broadcast %cst_15 : f32 to vector<1x128xf32>
    %13 = vector.extract_strided_slice %11 {offsets = [0, 0], sizes = [1, 128], strides = [1, 1]} : vector<8x128xf32> to vector<1x128xf32>
    %c0_16 = arith.constant 0 : index
    %c0_17 = arith.constant 0 : index
    %14 = vector.load %arg3[%c0_16, %c0_17] : memref<128x128xf32, #tpu.memory_space<vmem>>, vector<128x128xf32>
    %cst_18 = arith.constant dense<0.000000e+00> : vector<1x128xf32>
    %15 = tpu.matmul %12, %14, %cst_18 {dimension_numbers = #tpu.dot_dimension_numbers<[1], [0], [0], [1], [0, 0, 1, 1], [], []>} : vector<1x128xf32>, vector<128x128xf32>, vector<1x128xf32> -> vector<1x128xf32>
    %16 = arith.addf %15, %1 : vector<1x128xf32>
    %17 = arith.addf %13, %16 : vector<1x128xf32>
    %18 = arith.negf %17 : vector<1x128xf32>
    %19 = math.exp %18 : vector<1x128xf32>
    %cst_19 = arith.constant 1.000000e+00 : f32
    %20 = vector.broadcast %cst_19 : f32 to vector<1x128xf32>
    %21 = arith.addf %20, %19 : vector<1x128xf32>
    %22 = arith.divf %20, %21 : vector<1x128xf32>
    %c64_i32 = arith.constant 64 : i32
    %23 = tpu.dynamic_rotate %22 by %c64_i32 dim 1 : vector<1x128xf32>, i32 -> vector<1x128xf32>
    %24 = arith.mulf %23, %16 : vector<1x128xf32>
    %25 = arith.addf %13, %24 : vector<1x128xf32>
    %26 = math.tanh %25 : vector<1x128xf32>
    %c64_i32_20 = arith.constant 64 : i32
    %27 = tpu.dynamic_rotate %26 by %c64_i32_20 dim 1 : vector<1x128xf32>, i32 -> vector<1x128xf32>
    %c96_i32 = arith.constant 96 : i32
    %28 = tpu.dynamic_rotate %22 by %c96_i32 dim 1 : vector<1x128xf32>, i32 -> vector<1x128xf32>
    %29 = arith.subf %12, %27 : vector<1x128xf32>
    %30 = arith.mulf %28, %29 : vector<1x128xf32>
    %31 = arith.addf %27, %30 : vector<1x128xf32>
    %32 = vector.extract_strided_slice %11 {offsets = [1, 0], sizes = [1, 128], strides = [1, 1]} : vector<8x128xf32> to vector<1x128xf32>
    %c0_21 = arith.constant 0 : index
    %c0_22 = arith.constant 0 : index
    %33 = vector.load %arg3[%c0_21, %c0_22] : memref<128x128xf32, #tpu.memory_space<vmem>>, vector<128x128xf32>
    %cst_23 = arith.constant dense<0.000000e+00> : vector<1x128xf32>
    %34 = tpu.matmul %31, %33, %cst_23 {dimension_numbers = #tpu.dot_dimension_numbers<[1], [0], [0], [1], [0, 0, 1, 1], [], []>} : vector<1x128xf32>, vector<128x128xf32>, vector<1x128xf32> -> vector<1x128xf32>
    %35 = arith.addf %34, %1 : vector<1x128xf32>
    %36 = arith.addf %32, %35 : vector<1x128xf32>
    %37 = arith.negf %36 : vector<1x128xf32>
    %38 = math.exp %37 : vector<1x128xf32>
    %cst_24 = arith.constant 1.000000e+00 : f32
    %39 = vector.broadcast %cst_24 : f32 to vector<1x128xf32>
    %40 = arith.addf %39, %38 : vector<1x128xf32>
    %41 = arith.divf %39, %40 : vector<1x128xf32>
    %c64_i32_25 = arith.constant 64 : i32
    %42 = tpu.dynamic_rotate %41 by %c64_i32_25 dim 1 : vector<1x128xf32>, i32 -> vector<1x128xf32>
    %43 = arith.mulf %42, %35 : vector<1x128xf32>
    %44 = arith.addf %32, %43 : vector<1x128xf32>
    %45 = math.tanh %44 : vector<1x128xf32>
    %c64_i32_26 = arith.constant 64 : i32
    %46 = tpu.dynamic_rotate %45 by %c64_i32_26 dim 1 : vector<1x128xf32>, i32 -> vector<1x128xf32>
    %c96_i32_27 = arith.constant 96 : i32
    %47 = tpu.dynamic_rotate %41 by %c96_i32_27 dim 1 : vector<1x128xf32>, i32 -> vector<1x128xf32>
    %48 = arith.subf %31, %46 : vector<1x128xf32>
    %49 = arith.mulf %47, %48 : vector<1x128xf32>
    %50 = arith.addf %46, %49 : vector<1x128xf32>
    %51 = vector.extract_strided_slice %11 {offsets = [2, 0], sizes = [1, 128], strides = [1, 1]} : vector<8x128xf32> to vector<1x128xf32>
    %c0_28 = arith.constant 0 : index
    %c0_29 = arith.constant 0 : index
    %52 = vector.load %arg3[%c0_28, %c0_29] : memref<128x128xf32, #tpu.memory_space<vmem>>, vector<128x128xf32>
    %cst_30 = arith.constant dense<0.000000e+00> : vector<1x128xf32>
    %53 = tpu.matmul %50, %52, %cst_30 {dimension_numbers = #tpu.dot_dimension_numbers<[1], [0], [0], [1], [0, 0, 1, 1], [], []>} : vector<1x128xf32>, vector<128x128xf32>, vector<1x128xf32> -> vector<1x128xf32>
    %54 = arith.addf %53, %1 : vector<1x128xf32>
    %55 = arith.addf %51, %54 : vector<1x128xf32>
    %56 = arith.negf %55 : vector<1x128xf32>
    %57 = math.exp %56 : vector<1x128xf32>
    %cst_31 = arith.constant 1.000000e+00 : f32
    %58 = vector.broadcast %cst_31 : f32 to vector<1x128xf32>
    %59 = arith.addf %58, %57 : vector<1x128xf32>
    %60 = arith.divf %58, %59 : vector<1x128xf32>
    %c64_i32_32 = arith.constant 64 : i32
    %61 = tpu.dynamic_rotate %60 by %c64_i32_32 dim 1 : vector<1x128xf32>, i32 -> vector<1x128xf32>
    %62 = arith.mulf %61, %54 : vector<1x128xf32>
    %63 = arith.addf %51, %62 : vector<1x128xf32>
    %64 = math.tanh %63 : vector<1x128xf32>
    %c64_i32_33 = arith.constant 64 : i32
    %65 = tpu.dynamic_rotate %64 by %c64_i32_33 dim 1 : vector<1x128xf32>, i32 -> vector<1x128xf32>
    %c96_i32_34 = arith.constant 96 : i32
    %66 = tpu.dynamic_rotate %60 by %c96_i32_34 dim 1 : vector<1x128xf32>, i32 -> vector<1x128xf32>
    %67 = arith.subf %50, %65 : vector<1x128xf32>
    %68 = arith.mulf %66, %67 : vector<1x128xf32>
    %69 = arith.addf %65, %68 : vector<1x128xf32>
    %70 = vector.extract_strided_slice %11 {offsets = [3, 0], sizes = [1, 128], strides = [1, 1]} : vector<8x128xf32> to vector<1x128xf32>
    %c0_35 = arith.constant 0 : index
    %c0_36 = arith.constant 0 : index
    %71 = vector.load %arg3[%c0_35, %c0_36] : memref<128x128xf32, #tpu.memory_space<vmem>>, vector<128x128xf32>
    %cst_37 = arith.constant dense<0.000000e+00> : vector<1x128xf32>
    %72 = tpu.matmul %69, %71, %cst_37 {dimension_numbers = #tpu.dot_dimension_numbers<[1], [0], [0], [1], [0, 0, 1, 1], [], []>} : vector<1x128xf32>, vector<128x128xf32>, vector<1x128xf32> -> vector<1x128xf32>
    %73 = arith.addf %72, %1 : vector<1x128xf32>
    %74 = arith.addf %70, %73 : vector<1x128xf32>
    %75 = arith.negf %74 : vector<1x128xf32>
    %76 = math.exp %75 : vector<1x128xf32>
    %cst_38 = arith.constant 1.000000e+00 : f32
    %77 = vector.broadcast %cst_38 : f32 to vector<1x128xf32>
    %78 = arith.addf %77, %76 : vector<1x128xf32>
    %79 = arith.divf %77, %78 : vector<1x128xf32>
    %c64_i32_39 = arith.constant 64 : i32
    %80 = tpu.dynamic_rotate %79 by %c64_i32_39 dim 1 : vector<1x128xf32>, i32 -> vector<1x128xf32>
    %81 = arith.mulf %80, %73 : vector<1x128xf32>
    %82 = arith.addf %70, %81 : vector<1x128xf32>
    %83 = math.tanh %82 : vector<1x128xf32>
    %c64_i32_40 = arith.constant 64 : i32
    %84 = tpu.dynamic_rotate %83 by %c64_i32_40 dim 1 : vector<1x128xf32>, i32 -> vector<1x128xf32>
    %c96_i32_41 = arith.constant 96 : i32
    %85 = tpu.dynamic_rotate %79 by %c96_i32_41 dim 1 : vector<1x128xf32>, i32 -> vector<1x128xf32>
    %86 = arith.subf %69, %84 : vector<1x128xf32>
    %87 = arith.mulf %85, %86 : vector<1x128xf32>
    %88 = arith.addf %84, %87 : vector<1x128xf32>
    %89 = vector.extract_strided_slice %11 {offsets = [4, 0], sizes = [1, 128], strides = [1, 1]} : vector<8x128xf32> to vector<1x128xf32>
    %c0_42 = arith.constant 0 : index
    %c0_43 = arith.constant 0 : index
    %90 = vector.load %arg3[%c0_42, %c0_43] : memref<128x128xf32, #tpu.memory_space<vmem>>, vector<128x128xf32>
    %cst_44 = arith.constant dense<0.000000e+00> : vector<1x128xf32>
    %91 = tpu.matmul %88, %90, %cst_44 {dimension_numbers = #tpu.dot_dimension_numbers<[1], [0], [0], [1], [0, 0, 1, 1], [], []>} : vector<1x128xf32>, vector<128x128xf32>, vector<1x128xf32> -> vector<1x128xf32>
    %92 = arith.addf %91, %1 : vector<1x128xf32>
    %93 = arith.addf %89, %92 : vector<1x128xf32>
    %94 = arith.negf %93 : vector<1x128xf32>
    %95 = math.exp %94 : vector<1x128xf32>
    %cst_45 = arith.constant 1.000000e+00 : f32
    %96 = vector.broadcast %cst_45 : f32 to vector<1x128xf32>
    %97 = arith.addf %96, %95 : vector<1x128xf32>
    %98 = arith.divf %96, %97 : vector<1x128xf32>
    %c64_i32_46 = arith.constant 64 : i32
    %99 = tpu.dynamic_rotate %98 by %c64_i32_46 dim 1 : vector<1x128xf32>, i32 -> vector<1x128xf32>
    %100 = arith.mulf %99, %92 : vector<1x128xf32>
    %101 = arith.addf %89, %100 : vector<1x128xf32>
    %102 = math.tanh %101 : vector<1x128xf32>
    %c64_i32_47 = arith.constant 64 : i32
    %103 = tpu.dynamic_rotate %102 by %c64_i32_47 dim 1 : vector<1x128xf32>, i32 -> vector<1x128xf32>
    %c96_i32_48 = arith.constant 96 : i32
    %104 = tpu.dynamic_rotate %98 by %c96_i32_48 dim 1 : vector<1x128xf32>, i32 -> vector<1x128xf32>
    %105 = arith.subf %88, %103 : vector<1x128xf32>
    %106 = arith.mulf %104, %105 : vector<1x128xf32>
    %107 = arith.addf %103, %106 : vector<1x128xf32>
    %108 = vector.extract_strided_slice %11 {offsets = [5, 0], sizes = [1, 128], strides = [1, 1]} : vector<8x128xf32> to vector<1x128xf32>
    %c0_49 = arith.constant 0 : index
    %c0_50 = arith.constant 0 : index
    %109 = vector.load %arg3[%c0_49, %c0_50] : memref<128x128xf32, #tpu.memory_space<vmem>>, vector<128x128xf32>
    %cst_51 = arith.constant dense<0.000000e+00> : vector<1x128xf32>
    %110 = tpu.matmul %107, %109, %cst_51 {dimension_numbers = #tpu.dot_dimension_numbers<[1], [0], [0], [1], [0, 0, 1, 1], [], []>} : vector<1x128xf32>, vector<128x128xf32>, vector<1x128xf32> -> vector<1x128xf32>
    %111 = arith.addf %110, %1 : vector<1x128xf32>
    %112 = arith.addf %108, %111 : vector<1x128xf32>
    %113 = arith.negf %112 : vector<1x128xf32>
    %114 = math.exp %113 : vector<1x128xf32>
    %cst_52 = arith.constant 1.000000e+00 : f32
    %115 = vector.broadcast %cst_52 : f32 to vector<1x128xf32>
    %116 = arith.addf %115, %114 : vector<1x128xf32>
    %117 = arith.divf %115, %116 : vector<1x128xf32>
    %c64_i32_53 = arith.constant 64 : i32
    %118 = tpu.dynamic_rotate %117 by %c64_i32_53 dim 1 : vector<1x128xf32>, i32 -> vector<1x128xf32>
    %119 = arith.mulf %118, %111 : vector<1x128xf32>
    %120 = arith.addf %108, %119 : vector<1x128xf32>
    %121 = math.tanh %120 : vector<1x128xf32>
    %c64_i32_54 = arith.constant 64 : i32
    %122 = tpu.dynamic_rotate %121 by %c64_i32_54 dim 1 : vector<1x128xf32>, i32 -> vector<1x128xf32>
    %c96_i32_55 = arith.constant 96 : i32
    %123 = tpu.dynamic_rotate %117 by %c96_i32_55 dim 1 : vector<1x128xf32>, i32 -> vector<1x128xf32>
    %124 = arith.subf %107, %122 : vector<1x128xf32>
    %125 = arith.mulf %123, %124 : vector<1x128xf32>
    %126 = arith.addf %122, %125 : vector<1x128xf32>
    %127 = vector.extract_strided_slice %11 {offsets = [6, 0], sizes = [1, 128], strides = [1, 1]} : vector<8x128xf32> to vector<1x128xf32>
    %c0_56 = arith.constant 0 : index
    %c0_57 = arith.constant 0 : index
    %128 = vector.load %arg3[%c0_56, %c0_57] : memref<128x128xf32, #tpu.memory_space<vmem>>, vector<128x128xf32>
    %cst_58 = arith.constant dense<0.000000e+00> : vector<1x128xf32>
    %129 = tpu.matmul %126, %128, %cst_58 {dimension_numbers = #tpu.dot_dimension_numbers<[1], [0], [0], [1], [0, 0, 1, 1], [], []>} : vector<1x128xf32>, vector<128x128xf32>, vector<1x128xf32> -> vector<1x128xf32>
    %130 = arith.addf %129, %1 : vector<1x128xf32>
    %131 = arith.addf %127, %130 : vector<1x128xf32>
    %132 = arith.negf %131 : vector<1x128xf32>
    %133 = math.exp %132 : vector<1x128xf32>
    %cst_59 = arith.constant 1.000000e+00 : f32
    %134 = vector.broadcast %cst_59 : f32 to vector<1x128xf32>
    %135 = arith.addf %134, %133 : vector<1x128xf32>
    %136 = arith.divf %134, %135 : vector<1x128xf32>
    %c64_i32_60 = arith.constant 64 : i32
    %137 = tpu.dynamic_rotate %136 by %c64_i32_60 dim 1 : vector<1x128xf32>, i32 -> vector<1x128xf32>
    %138 = arith.mulf %137, %130 : vector<1x128xf32>
    %139 = arith.addf %127, %138 : vector<1x128xf32>
    %140 = math.tanh %139 : vector<1x128xf32>
    %c64_i32_61 = arith.constant 64 : i32
    %141 = tpu.dynamic_rotate %140 by %c64_i32_61 dim 1 : vector<1x128xf32>, i32 -> vector<1x128xf32>
    %c96_i32_62 = arith.constant 96 : i32
    %142 = tpu.dynamic_rotate %136 by %c96_i32_62 dim 1 : vector<1x128xf32>, i32 -> vector<1x128xf32>
    %143 = arith.subf %126, %141 : vector<1x128xf32>
    %144 = arith.mulf %142, %143 : vector<1x128xf32>
    %145 = arith.addf %141, %144 : vector<1x128xf32>
    %146 = vector.extract_strided_slice %11 {offsets = [7, 0], sizes = [1, 128], strides = [1, 1]} : vector<8x128xf32> to vector<1x128xf32>
    %c0_63 = arith.constant 0 : index
    %c0_64 = arith.constant 0 : index
    %147 = vector.load %arg3[%c0_63, %c0_64] : memref<128x128xf32, #tpu.memory_space<vmem>>, vector<128x128xf32>
    %cst_65 = arith.constant dense<0.000000e+00> : vector<1x128xf32>
    %148 = tpu.matmul %145, %147, %cst_65 {dimension_numbers = #tpu.dot_dimension_numbers<[1], [0], [0], [1], [0, 0, 1, 1], [], []>} : vector<1x128xf32>, vector<128x128xf32>, vector<1x128xf32> -> vector<1x128xf32>
    %149 = arith.addf %148, %1 : vector<1x128xf32>
    %150 = arith.addf %146, %149 : vector<1x128xf32>
    %151 = arith.negf %150 : vector<1x128xf32>
    %152 = math.exp %151 : vector<1x128xf32>
    %cst_66 = arith.constant 1.000000e+00 : f32
    %153 = vector.broadcast %cst_66 : f32 to vector<1x128xf32>
    %154 = arith.addf %153, %152 : vector<1x128xf32>
    %155 = arith.divf %153, %154 : vector<1x128xf32>
    %c64_i32_67 = arith.constant 64 : i32
    %156 = tpu.dynamic_rotate %155 by %c64_i32_67 dim 1 : vector<1x128xf32>, i32 -> vector<1x128xf32>
    %157 = arith.mulf %156, %149 : vector<1x128xf32>
    %158 = arith.addf %146, %157 : vector<1x128xf32>
    %159 = math.tanh %158 : vector<1x128xf32>
    %c64_i32_68 = arith.constant 64 : i32
    %160 = tpu.dynamic_rotate %159 by %c64_i32_68 dim 1 : vector<1x128xf32>, i32 -> vector<1x128xf32>
    %c96_i32_69 = arith.constant 96 : i32
    %161 = tpu.dynamic_rotate %155 by %c96_i32_69 dim 1 : vector<1x128xf32>, i32 -> vector<1x128xf32>
    %162 = arith.subf %145, %160 : vector<1x128xf32>
    %163 = arith.mulf %161, %162 : vector<1x128xf32>
    %164 = arith.addf %160, %163 : vector<1x128xf32>
    %165 = vector.extract_strided_slice %164 {offsets = [0, 0], sizes = [1, 32], strides = [1, 1]} : vector<1x128xf32> to vector<1x32xf32>
    %c1 = arith.constant 1 : index
    %c0_70 = arith.constant 0 : index
    %c0_71 = arith.constant 0 : index
    %166 = vector.load %arg1[%c1, %c0_70, %c0_71] : memref<2x8x4xf32, #tpu.memory_space<vmem>>, vector<1x8x4xf32>
    %167 = vector.shape_cast %166 : vector<1x8x4xf32> to vector<8x4xf32>
    %c0_72 = arith.constant 0 : index
    %c0_73 = arith.constant 0 : index
    %168 = vector.load %arg7[%c0_72, %c0_73] : memref<8x128xf32, #tpu.memory_space<vmem>>, vector<8x4xf32>
    tpu.vector_store %arg7[%c0_72, %c0_73], %167 {strides = array<i32>} : memref<8x128xf32, #tpu.memory_space<vmem>>, vector<8x4xf32>,
    %c0_74 = arith.constant 0 : index
    %c0_75 = arith.constant 0 : index
    %169 = vector.load %arg7[%c0_74, %c0_75] : memref<8x128xf32, #tpu.memory_space<vmem>>, vector<8x128xf32>
    %c0_76 = arith.constant 0 : index
    %c0_77 = arith.constant 0 : index
    %170 = vector.load %arg2[%c0_76, %c0_77] : memref<128x128xf32, #tpu.memory_space<vmem>>, vector<128x128xf32>
    %cst_78 = arith.constant dense<0.000000e+00> : vector<8x128xf32>
    %171 = tpu.matmul %169, %170, %cst_78 {dimension_numbers = #tpu.dot_dimension_numbers<[1], [0], [0], [1], [0, 0, 1, 1], [], []>} : vector<8x128xf32>, vector<128x128xf32>, vector<8x128xf32> -> vector<8x128xf32>
    %172 = vector.broadcast %0 : vector<1x128xf32> to vector<8x128xf32>
    %173 = arith.addf %171, %172 : vector<8x128xf32>
    %cst_79 = arith.constant 0.000000e+00 : f32
    %174 = vector.broadcast %cst_79 : f32 to vector<1x128xf32>
    %175 = vector.extract_strided_slice %173 {offsets = [0, 0], sizes = [1, 128], strides = [1, 1]} : vector<8x128xf32> to vector<1x128xf32>
    %c0_80 = arith.constant 0 : index
    %c0_81 = arith.constant 0 : index
    %176 = vector.load %arg3[%c0_80, %c0_81] : memref<128x128xf32, #tpu.memory_space<vmem>>, vector<128x128xf32>
    %cst_82 = arith.constant dense<0.000000e+00> : vector<1x128xf32>
    %177 = tpu.matmul %174, %176, %cst_82 {dimension_numbers = #tpu.dot_dimension_numbers<[1], [0], [0], [1], [0, 0, 1, 1], [], []>} : vector<1x128xf32>, vector<128x128xf32>, vector<1x128xf32> -> vector<1x128xf32>
    %178 = arith.addf %177, %1 : vector<1x128xf32>
    %179 = arith.addf %175, %178 : vector<1x128xf32>
    %180 = arith.negf %179 : vector<1x128xf32>
    %181 = math.exp %180 : vector<1x128xf32>
    %cst_83 = arith.constant 1.000000e+00 : f32
    %182 = vector.broadcast %cst_83 : f32 to vector<1x128xf32>
    %183 = arith.addf %182, %181 : vector<1x128xf32>
    %184 = arith.divf %182, %183 : vector<1x128xf32>
    %c64_i32_84 = arith.constant 64 : i32
    %185 = tpu.dynamic_rotate %184 by %c64_i32_84 dim 1 : vector<1x128xf32>, i32 -> vector<1x128xf32>
    %186 = arith.mulf %185, %178 : vector<1x128xf32>
    %187 = arith.addf %175, %186 : vector<1x128xf32>
    %188 = math.tanh %187 : vector<1x128xf32>
    %c64_i32_85 = arith.constant 64 : i32
    %189 = tpu.dynamic_rotate %188 by %c64_i32_85 dim 1 : vector<1x128xf32>, i32 -> vector<1x128xf32>
    %c96_i32_86 = arith.constant 96 : i32
    %190 = tpu.dynamic_rotate %184 by %c96_i32_86 dim 1 : vector<1x128xf32>, i32 -> vector<1x128xf32>
    %191 = arith.subf %174, %189 : vector<1x128xf32>
    %192 = arith.mulf %190, %191 : vector<1x128xf32>
    %193 = arith.addf %189, %192 : vector<1x128xf32>
    %194 = vector.extract_strided_slice %173 {offsets = [1, 0], sizes = [1, 128], strides = [1, 1]} : vector<8x128xf32> to vector<1x128xf32>
    %c0_87 = arith.constant 0 : index
    %c0_88 = arith.constant 0 : index
    %195 = vector.load %arg3[%c0_87, %c0_88] : memref<128x128xf32, #tpu.memory_space<vmem>>, vector<128x128xf32>
    %cst_89 = arith.constant dense<0.000000e+00> : vector<1x128xf32>
    %196 = tpu.matmul %193, %195, %cst_89 {dimension_numbers = #tpu.dot_dimension_numbers<[1], [0], [0], [1], [0, 0, 1, 1], [], []>} : vector<1x128xf32>, vector<128x128xf32>, vector<1x128xf32> -> vector<1x128xf32>
    %197 = arith.addf %196, %1 : vector<1x128xf32>
    %198 = arith.addf %194, %197 : vector<1x128xf32>
    %199 = arith.negf %198 : vector<1x128xf32>
    %200 = math.exp %199 : vector<1x128xf32>
    %cst_90 = arith.constant 1.000000e+00 : f32
    %201 = vector.broadcast %cst_90 : f32 to vector<1x128xf32>
    %202 = arith.addf %201, %200 : vector<1x128xf32>
    %203 = arith.divf %201, %202 : vector<1x128xf32>
    %c64_i32_91 = arith.constant 64 : i32
    %204 = tpu.dynamic_rotate %203 by %c64_i32_91 dim 1 : vector<1x128xf32>, i32 -> vector<1x128xf32>
    %205 = arith.mulf %204, %197 : vector<1x128xf32>
    %206 = arith.addf %194, %205 : vector<1x128xf32>
    %207 = math.tanh %206 : vector<1x128xf32>
    %c64_i32_92 = arith.constant 64 : i32
    %208 = tpu.dynamic_rotate %207 by %c64_i32_92 dim 1 : vector<1x128xf32>, i32 -> vector<1x128xf32>
    %c96_i32_93 = arith.constant 96 : i32
    %209 = tpu.dynamic_rotate %203 by %c96_i32_93 dim 1 : vector<1x128xf32>, i32 -> vector<1x128xf32>
    %210 = arith.subf %193, %208 : vector<1x128xf32>
    %211 = arith.mulf %209, %210 : vector<1x128xf32>
    %212 = arith.addf %208, %211 : vector<1x128xf32>
    %213 = vector.extract_strided_slice %173 {offsets = [2, 0], sizes = [1, 128], strides = [1, 1]} : vector<8x128xf32> to vector<1x128xf32>
    %c0_94 = arith.constant 0 : index
    %c0_95 = arith.constant 0 : index
    %214 = vector.load %arg3[%c0_94, %c0_95] : memref<128x128xf32, #tpu.memory_space<vmem>>, vector<128x128xf32>
    %cst_96 = arith.constant dense<0.000000e+00> : vector<1x128xf32>
    %215 = tpu.matmul %212, %214, %cst_96 {dimension_numbers = #tpu.dot_dimension_numbers<[1], [0], [0], [1], [0, 0, 1, 1], [], []>} : vector<1x128xf32>, vector<128x128xf32>, vector<1x128xf32> -> vector<1x128xf32>
    %216 = arith.addf %215, %1 : vector<1x128xf32>
    %217 = arith.addf %213, %216 : vector<1x128xf32>
    %218 = arith.negf %217 : vector<1x128xf32>
    %219 = math.exp %218 : vector<1x128xf32>
    %cst_97 = arith.constant 1.000000e+00 : f32
    %220 = vector.broadcast %cst_97 : f32 to vector<1x128xf32>
    %221 = arith.addf %220, %219 : vector<1x128xf32>
    %222 = arith.divf %220, %221 : vector<1x128xf32>
    %c64_i32_98 = arith.constant 64 : i32
    %223 = tpu.dynamic_rotate %222 by %c64_i32_98 dim 1 : vector<1x128xf32>, i32 -> vector<1x128xf32>
    %224 = arith.mulf %223, %216 : vector<1x128xf32>
    %225 = arith.addf %213, %224 : vector<1x128xf32>
    %226 = math.tanh %225 : vector<1x128xf32>
    %c64_i32_99 = arith.constant 64 : i32
    %227 = tpu.dynamic_rotate %226 by %c64_i32_99 dim 1 : vector<1x128xf32>, i32 -> vector<1x128xf32>
    %c96_i32_100 = arith.constant 96 : i32
    %228 = tpu.dynamic_rotate %222 by %c96_i32_100 dim 1 : vector<1x128xf32>, i32 -> vector<1x128xf32>
    %229 = arith.subf %212, %227 : vector<1x128xf32>
    %230 = arith.mulf %228, %229 : vector<1x128xf32>
    %231 = arith.addf %227, %230 : vector<1x128xf32>
    %232 = vector.extract_strided_slice %173 {offsets = [3, 0], sizes = [1, 128], strides = [1, 1]} : vector<8x128xf32> to vector<1x128xf32>
    %c0_101 = arith.constant 0 : index
    %c0_102 = arith.constant 0 : index
    %233 = vector.load %arg3[%c0_101, %c0_102] : memref<128x128xf32, #tpu.memory_space<vmem>>, vector<128x128xf32>
    %cst_103 = arith.constant dense<0.000000e+00> : vector<1x128xf32>
    %234 = tpu.matmul %231, %233, %cst_103 {dimension_numbers = #tpu.dot_dimension_numbers<[1], [0], [0], [1], [0, 0, 1, 1], [], []>} : vector<1x128xf32>, vector<128x128xf32>, vector<1x128xf32> -> vector<1x128xf32>
    %235 = arith.addf %234, %1 : vector<1x128xf32>
    %236 = arith.addf %232, %235 : vector<1x128xf32>
    %237 = arith.negf %236 : vector<1x128xf32>
    %238 = math.exp %237 : vector<1x128xf32>
    %cst_104 = arith.constant 1.000000e+00 : f32
    %239 = vector.broadcast %cst_104 : f32 to vector<1x128xf32>
    %240 = arith.addf %239, %238 : vector<1x128xf32>
    %241 = arith.divf %239, %240 : vector<1x128xf32>
    %c64_i32_105 = arith.constant 64 : i32
    %242 = tpu.dynamic_rotate %241 by %c64_i32_105 dim 1 : vector<1x128xf32>, i32 -> vector<1x128xf32>
    %243 = arith.mulf %242, %235 : vector<1x128xf32>
    %244 = arith.addf %232, %243 : vector<1x128xf32>
    %245 = math.tanh %244 : vector<1x128xf32>
    %c64_i32_106 = arith.constant 64 : i32
    %246 = tpu.dynamic_rotate %245 by %c64_i32_106 dim 1 : vector<1x128xf32>, i32 -> vector<1x128xf32>
    %c96_i32_107 = arith.constant 96 : i32
    %247 = tpu.dynamic_rotate %241 by %c96_i32_107 dim 1 : vector<1x128xf32>, i32 -> vector<1x128xf32>
    %248 = arith.subf %231, %246 : vector<1x128xf32>
    %249 = arith.mulf %247, %248 : vector<1x128xf32>
    %250 = arith.addf %246, %249 : vector<1x128xf32>
    %251 = vector.extract_strided_slice %173 {offsets = [4, 0], sizes = [1, 128], strides = [1, 1]} : vector<8x128xf32> to vector<1x128xf32>
    %c0_108 = arith.constant 0 : index
    %c0_109 = arith.constant 0 : index
    %252 = vector.load %arg3[%c0_108, %c0_109] : memref<128x128xf32, #tpu.memory_space<vmem>>, vector<128x128xf32>
    %cst_110 = arith.constant dense<0.000000e+00> : vector<1x128xf32>
    %253 = tpu.matmul %250, %252, %cst_110 {dimension_numbers = #tpu.dot_dimension_numbers<[1], [0], [0], [1], [0, 0, 1, 1], [], []>} : vector<1x128xf32>, vector<128x128xf32>, vector<1x128xf32> -> vector<1x128xf32>
    %254 = arith.addf %253, %1 : vector<1x128xf32>
    %255 = arith.addf %251, %254 : vector<1x128xf32>
    %256 = arith.negf %255 : vector<1x128xf32>
    %257 = math.exp %256 : vector<1x128xf32>
    %cst_111 = arith.constant 1.000000e+00 : f32
    %258 = vector.broadcast %cst_111 : f32 to vector<1x128xf32>
    %259 = arith.addf %258, %257 : vector<1x128xf32>
    %260 = arith.divf %258, %259 : vector<1x128xf32>
    %c64_i32_112 = arith.constant 64 : i32
    %261 = tpu.dynamic_rotate %260 by %c64_i32_112 dim 1 : vector<1x128xf32>, i32 -> vector<1x128xf32>
    %262 = arith.mulf %261, %254 : vector<1x128xf32>
    %263 = arith.addf %251, %262 : vector<1x128xf32>
    %264 = math.tanh %263 : vector<1x128xf32>
    %c64_i32_113 = arith.constant 64 : i32
    %265 = tpu.dynamic_rotate %264 by %c64_i32_113 dim 1 : vector<1x128xf32>, i32 -> vector<1x128xf32>
    %c96_i32_114 = arith.constant 96 : i32
    %266 = tpu.dynamic_rotate %260 by %c96_i32_114 dim 1 : vector<1x128xf32>, i32 -> vector<1x128xf32>
    %267 = arith.subf %250, %265 : vector<1x128xf32>
    %268 = arith.mulf %266, %267 : vector<1x128xf32>
    %269 = arith.addf %265, %268 : vector<1x128xf32>
    %270 = vector.extract_strided_slice %173 {offsets = [5, 0], sizes = [1, 128], strides = [1, 1]} : vector<8x128xf32> to vector<1x128xf32>
    %c0_115 = arith.constant 0 : index
    %c0_116 = arith.constant 0 : index
    %271 = vector.load %arg3[%c0_115, %c0_116] : memref<128x128xf32, #tpu.memory_space<vmem>>, vector<128x128xf32>
    %cst_117 = arith.constant dense<0.000000e+00> : vector<1x128xf32>
    %272 = tpu.matmul %269, %271, %cst_117 {dimension_numbers = #tpu.dot_dimension_numbers<[1], [0], [0], [1], [0, 0, 1, 1], [], []>} : vector<1x128xf32>, vector<128x128xf32>, vector<1x128xf32> -> vector<1x128xf32>
    %273 = arith.addf %272, %1 : vector<1x128xf32>
    %274 = arith.addf %270, %273 : vector<1x128xf32>
    %275 = arith.negf %274 : vector<1x128xf32>
    %276 = math.exp %275 : vector<1x128xf32>
    %cst_118 = arith.constant 1.000000e+00 : f32
    %277 = vector.broadcast %cst_118 : f32 to vector<1x128xf32>
    %278 = arith.addf %277, %276 : vector<1x128xf32>
    %279 = arith.divf %277, %278 : vector<1x128xf32>
    %c64_i32_119 = arith.constant 64 : i32
    %280 = tpu.dynamic_rotate %279 by %c64_i32_119 dim 1 : vector<1x128xf32>, i32 -> vector<1x128xf32>
    %281 = arith.mulf %280, %273 : vector<1x128xf32>
    %282 = arith.addf %270, %281 : vector<1x128xf32>
    %283 = math.tanh %282 : vector<1x128xf32>
    %c64_i32_120 = arith.constant 64 : i32
    %284 = tpu.dynamic_rotate %283 by %c64_i32_120 dim 1 : vector<1x128xf32>, i32 -> vector<1x128xf32>
    %c96_i32_121 = arith.constant 96 : i32
    %285 = tpu.dynamic_rotate %279 by %c96_i32_121 dim 1 : vector<1x128xf32>, i32 -> vector<1x128xf32>
    %286 = arith.subf %269, %284 : vector<1x128xf32>
    %287 = arith.mulf %285, %286 : vector<1x128xf32>
    %288 = arith.addf %284, %287 : vector<1x128xf32>
    %289 = vector.extract_strided_slice %173 {offsets = [6, 0], sizes = [1, 128], strides = [1, 1]} : vector<8x128xf32> to vector<1x128xf32>
    %c0_122 = arith.constant 0 : index
    %c0_123 = arith.constant 0 : index
    %290 = vector.load %arg3[%c0_122, %c0_123] : memref<128x128xf32, #tpu.memory_space<vmem>>, vector<128x128xf32>
    %cst_124 = arith.constant dense<0.000000e+00> : vector<1x128xf32>
    %291 = tpu.matmul %288, %290, %cst_124 {dimension_numbers = #tpu.dot_dimension_numbers<[1], [0], [0], [1], [0, 0, 1, 1], [], []>} : vector<1x128xf32>, vector<128x128xf32>, vector<1x128xf32> -> vector<1x128xf32>
    %292 = arith.addf %291, %1 : vector<1x128xf32>
    %293 = arith.addf %289, %292 : vector<1x128xf32>
    %294 = arith.negf %293 : vector<1x128xf32>
    %295 = math.exp %294 : vector<1x128xf32>
    %cst_125 = arith.constant 1.000000e+00 : f32
    %296 = vector.broadcast %cst_125 : f32 to vector<1x128xf32>
    %297 = arith.addf %296, %295 : vector<1x128xf32>
    %298 = arith.divf %296, %297 : vector<1x128xf32>
    %c64_i32_126 = arith.constant 64 : i32
    %299 = tpu.dynamic_rotate %298 by %c64_i32_126 dim 1 : vector<1x128xf32>, i32 -> vector<1x128xf32>
    %300 = arith.mulf %299, %292 : vector<1x128xf32>
    %301 = arith.addf %289, %300 : vector<1x128xf32>
    %302 = math.tanh %301 : vector<1x128xf32>
    %c64_i32_127 = arith.constant 64 : i32
    %303 = tpu.dynamic_rotate %302 by %c64_i32_127 dim 1 : vector<1x128xf32>, i32 -> vector<1x128xf32>
    %c96_i32_128 = arith.constant 96 : i32
    %304 = tpu.dynamic_rotate %298 by %c96_i32_128 dim 1 : vector<1x128xf32>, i32 -> vector<1x128xf32>
    %305 = arith.subf %288, %303 : vector<1x128xf32>
    %306 = arith.mulf %304, %305 : vector<1x128xf32>
    %307 = arith.addf %303, %306 : vector<1x128xf32>
    %308 = vector.extract_strided_slice %173 {offsets = [7, 0], sizes = [1, 128], strides = [1, 1]} : vector<8x128xf32> to vector<1x128xf32>
    %c0_129 = arith.constant 0 : index
    %c0_130 = arith.constant 0 : index
    %309 = vector.load %arg3[%c0_129, %c0_130] : memref<128x128xf32, #tpu.memory_space<vmem>>, vector<128x128xf32>
    %cst_131 = arith.constant dense<0.000000e+00> : vector<1x128xf32>
    %310 = tpu.matmul %307, %309, %cst_131 {dimension_numbers = #tpu.dot_dimension_numbers<[1], [0], [0], [1], [0, 0, 1, 1], [], []>} : vector<1x128xf32>, vector<128x128xf32>, vector<1x128xf32> -> vector<1x128xf32>
    %311 = arith.addf %310, %1 : vector<1x128xf32>
    %312 = arith.addf %308, %311 : vector<1x128xf32>
    %313 = arith.negf %312 : vector<1x128xf32>
    %314 = math.exp %313 : vector<1x128xf32>
    %cst_132 = arith.constant 1.000000e+00 : f32
    %315 = vector.broadcast %cst_132 : f32 to vector<1x128xf32>
    %316 = arith.addf %315, %314 : vector<1x128xf32>
    %317 = arith.divf %315, %316 : vector<1x128xf32>
    %c64_i32_133 = arith.constant 64 : i32
    %318 = tpu.dynamic_rotate %317 by %c64_i32_133 dim 1 : vector<1x128xf32>, i32 -> vector<1x128xf32>
    %319 = arith.mulf %318, %311 : vector<1x128xf32>
    %320 = arith.addf %308, %319 : vector<1x128xf32>
    %321 = math.tanh %320 : vector<1x128xf32>
    %c64_i32_134 = arith.constant 64 : i32
    %322 = tpu.dynamic_rotate %321 by %c64_i32_134 dim 1 : vector<1x128xf32>, i32 -> vector<1x128xf32>
    %c96_i32_135 = arith.constant 96 : i32
    %323 = tpu.dynamic_rotate %317 by %c96_i32_135 dim 1 : vector<1x128xf32>, i32 -> vector<1x128xf32>
    %324 = arith.subf %307, %322 : vector<1x128xf32>
    %325 = arith.mulf %323, %324 : vector<1x128xf32>
    %326 = arith.addf %322, %325 : vector<1x128xf32>
    %327 = vector.extract_strided_slice %326 {offsets = [0, 0], sizes = [1, 32], strides = [1, 1]} : vector<1x128xf32> to vector<1x32xf32>
    %328 = tpu.concatenate %165, %327 in 0 : vector<1x32xf32>, vector<1x32xf32> -> vector<2x32xf32>
    %329 = vector.shape_cast %328 : vector<2x32xf32> to vector<1x2x32xf32>
    %c0_136 = arith.constant 0 : index
    %c0_137 = arith.constant 0 : index
    %c0_138 = arith.constant 0 : index
    %330 = vector.load %arg6[%c0_136, %c0_137, %c0_138] : memref<1x2x32xf32, #tpu.memory_space<vmem>>, vector<1x2x32xf32>
    tpu.vector_store %arg6[%c0_136, %c0_137, %c0_138], %329 {strides = array<i32>} : memref<1x2x32xf32, #tpu.memory_space<vmem>>, vector<1x2x32xf32>,
    return
  }
  func.func @transform_0(%arg0: i32) -> (i32, i32, i32) {
    %c0_i32 = arith.constant 0 : i32
    %c0_i32_0 = arith.constant 0 : i32
    %c0_i32_1 = arith.constant 0 : i32
    %c0_i32_2 = arith.constant 0 : i32
    return %c0_i32, %c0_i32_0, %c0_i32_1 : i32, i32, i32
  }
  func.func @transform_1(%arg0: i32) -> (i32, i32) {
    %c0_i32 = arith.constant 0 : i32
    %c0_i32_0 = arith.constant 0 : i32
    %c0_i32_1 = arith.constant 0 : i32
    return %c0_i32, %c0_i32_0 : i32, i32
  }
  func.func @transform_2(%arg0: i32) -> (i32, i32) {
    %c0_i32 = arith.constant 0 : i32
    %c0_i32_0 = arith.constant 0 : i32
    %c0_i32_1 = arith.constant 0 : i32
    return %c0_i32, %c0_i32_0 : i32, i32
  }
  func.func @transform_3(%arg0: i32) -> (i32, i32) {
    %c0_i32 = arith.constant 0 : i32
    %c0_i32_0 = arith.constant 0 : i32
    %c0_i32_1 = arith.constant 0 : i32
    return %c0_i32, %c0_i32_0 : i32, i32
  }
  func.func @transform_4(%arg0: i32) -> (i32, i32) {
    %c0_i32 = arith.constant 0 : i32
    %c0_i32_0 = arith.constant 0 : i32
    %c0_i32_1 = arith.constant 0 : i32
    return %c0_i32, %c0_i32_0 : i32, i32
  }
  func.func @transform_5(%arg0: i32) -> (i32, i32, i32) {
    %c0_i32 = arith.constant 0 : i32
    %c0_i32_0 = arith.constant 0 : i32
    %c0_i32_1 = arith.constant 0 : i32
    %c0_i32_2 = arith.constant 0 : i32
    return %c0_i32, %c0_i32_0, %c0_i32_1 : i32, i32, i32
  }
}

</mosaic_0001>

<llo_original>
// kernel: encoder_forward.1
$region0: #{encoder_forward.1}
  #allocation0 [shape = 'u32[]', space=smem, size = 0x4, offset = 0x4, fixed_abs, tag = 'smem constant byte address 0x4 - core index']
  #allocation1 [shape = 'u32[144,128]{1,0:T(1,128)}', space=vmem, size = 0x12000, scoped, tag = 'internal scratch']
  #allocation2 [shape = 'f32[8,128]{1,0:T(8,128)}', space=vmem, size = 0x1000, scoped, tag = 'scratch operand']
  %s0 = inlined_call_operand.vmem [shape: f32[2,8,4], index: 0, kind: input, shape index: {}]
  %s1 = inlined_call_operand.hbm [shape: f32[128,128], index: 1, kind: input, shape index: {}]
  %s2 = inlined_call_operand.hbm [shape: f32[128,128], index: 2, kind: input, shape index: {}]
  %s3 = inlined_call_operand.vmem [shape: f32[1,128], index: 3, kind: input, shape index: {}]
  %s4 = inlined_call_operand.vmem [shape: f32[1,128], index: 4, kind: input, shape index: {}]
  %s5 = inlined_call_operand.hbm [shape: f32[1,2,32], index: 5, kind: output, shape index: {}]
  %s6 = sld [smem:[#allocation0]]
  $region38: #{encoder_forward.1} parent=0
    _
  %s8 = ssub.s32 1, %s6
  %s9 = scalar_select 0, %s8, %s6
  $region1: #{encoder_forward.1} parent=0
    #allocation3 [shape = 'u8[65536]{0}', space=vmem, size = 0x10000, scoped, tag = 'input window, operand 1, single buffered']
    #allocation4 [shape = 's32[1]{0}', space=sflag, size = 0x4, scoped, tag = 'scoped memory for encoder_forward.1']
    #allocation5 [shape = 's32[1]{0}', space=sflag, size = 0x4, scoped, tag = 'scoped memory for encoder_forward.1']
    #allocation6 [shape = 'u8[65536]{0}', space=vmem, size = 0x10000, scoped, tag = 'input window, operand 2, single buffered']
    #allocation7 [shape = 's32[1]{0}', space=sflag, size = 0x4, scoped, tag = 'scoped memory for encoder_forward.1']
    #allocation8 [shape = 'u8[1024]{0}', space=vmem, size = 0x400, scoped, tag = 'output window, operand 0, single buffered']
    %10 = vsyncpa [#allocation4], 0
    %11 = vsyncpa [#allocation7], 0
    %12 = vsyncpa [#allocation5], 0
    // Predicated region
    $region2: #{encoder_forward.1} parent=1 // pred_check
      _
    $region3: #{encoder_forward.1} parent=1 // pred_check_branch
      %14 = sbr.rel (0) target = $region5
    $region4: #{encoder_forward.1} parent=1 // pred_region
      _
    $region5: #{encoder_forward.1} parent=1 // pred_fallthru
      _
    // Predicated region
    $region6: #{encoder_forward.1} parent=1 // pred_check
      _
    $region7: #{encoder_forward.1} parent=1 // pred_check_branch
      %16 = sbr.rel (0) target = $region9
    $region8: #{encoder_forward.1} parent=1 // pred_region
      %s18 = ssub.s32 2048, 2048
      %19 = vsyncadd [#allocation4], %s18
      %s20 = sshll.u32 [#allocation3], 4
      %s21 = int_to_ptr.vmem [resolvable:$true] %s20
      %26 = dma.hbm_to_vmem [thread:$0]  %s1, 2048, %s21, [#allocation4], 128, 128, 8
    $region9: #{encoder_forward.1} parent=1 // pred_fallthru
      _
    // Predicated region
    $region10: #{encoder_forward.1} parent=1 // pred_check
      _
    $region11: #{encoder_forward.1} parent=1 // pred_check_branch
      %28 = sbr.rel (0) target = $region13
    $region12: #{encoder_forward.1} parent=1 // pred_region
      %s30 = ssub.s32 2048, 2048
      %31 = vsyncadd [#allocation7], %s30
      %s32 = sshll.u32 [#allocation6], 4
      %s33 = int_to_ptr.vmem [resolvable:$true] %s32
      %38 = dma.hbm_to_vmem [thread:$0]  %s2, 2048, %s33, [#allocation7], 128, 128, 8
    $region13: #{encoder_forward.1} parent=1 // pred_fallthru
      _
    // Predicated region
    $region14: #{encoder_forward.1} parent=1 // pred_check
      _
    $region15: #{encoder_forward.1} parent=1 // pred_check_branch
      %40 = sbr.rel (0) target = $region17
    $region16: #{encoder_forward.1} parent=1 // pred_region
      _
    $region17: #{encoder_forward.1} parent=1 // pred_fallthru
      _
    // Predicated region
    $region18: #{encoder_forward.1} parent=1 // pred_check
      _
    $region19: #{encoder_forward.1} parent=1 // pred_check_branch
      %42 = sbr.rel (0) target = $region21
    $region20: #{encoder_forward.1} parent=1 // pred_region
      _
    $region21: #{encoder_forward.1} parent=1 // pred_fallthru
      _
    // Predicated region
    $region22: #{encoder_forward.1} parent=1 // pred_check
      _
    $region23: #{encoder_forward.1} parent=1 // pred_check_branch
      %44 = sbr.rel (0) target = $region25
    $region24: #{encoder_forward.1} parent=1 // pred_region
      %45 = dma.done [#allocation4], 2048
    $region25: #{encoder_forward.1} parent=1 // pred_fallthru
      _
    // Predicated region
    $region26: #{encoder_forward.1} parent=1 // pred_check
      _
    $region27: #{encoder_forward.1} parent=1 // pred_check_branch
      %47 = sbr.rel (0) target = $region29
    $region28: #{encoder_forward.1} parent=1 // pred_region
      %48 = dma.done [#allocation7], 2048
    $region29: #{encoder_forward.1} parent=1 // pred_fallthru
      _
    %v49 = vld [vmem:[%s3] sm:$0x1]
    %v50 = vld [vmem:[%s4] sm:$0x1]
    %51 = vst [vmem:[#allocation2] sm:$0xff] 0.0
    %v52 = vld [vmem:[%s0] sm:$0xff]
    %vm53 = vcmask 31744
    %54 = vst.msk [vmem:[#allocation2] sm:$0xff] %vm53, %v52
    %v55 = vld [vmem:[#allocation2] sm:$0xff]
    %v56 = vld [vmem:[#allocation3] sm:$0xff]
    %v57 = vld [vmem:[#allocation3 + $0x8] sm:$0xff]
    %v58 = vld [vmem:[#allocation3 + $0x10] sm:$0xff]
    %v59 = vld [vmem:[#allocation3 + $0x18] sm:$0xff]
    %v60 = vld [vmem:[#allocation3 + $0x20] sm:$0xff]
    %v61 = vld [vmem:[#allocation3 + $0x28] sm:$0xff]
    %v62 = vld [vmem:[#allocation3 + $0x30] sm:$0xff]
    %v63 = vld [vmem:[#allocation3 + $0x38] sm:$0xff]
    %v64 = vld [vmem:[#allocation3 + $0x40] sm:$0xff]
    %v65 = vld [vmem:[#allocation3 + $0x48] sm:$0xff]
    %v66 = vld [vmem:[#allocation3 + $0x50] sm:$0xff]
    %v67 = vld [vmem:[#allocation3 + $0x58] sm:$0xff]
    %v68 = vld [vmem:[#allocation3 + $0x60] sm:$0xff]
    %v69 = vld [vmem:[#allocation3 + $0x68] sm:$0xff]
    %v70 = vld [vmem:[#allocation3 + $0x70] sm:$0xff]
    %v71 = vld [vmem:[#allocation3 + $0x78] sm:$0xff]
    %v73 = vlaneseq
    %v74 = vshrl.u32 %v73, 7
    %v75 = vsub.s32 0, %v74
    %v76 = vrot.slane %v49, %v75
    %78 = vmatprep.subr.mxu0 0.0
    %79 = vmatpush1.msra.mxu0 %v56
    %80 = vmatprep.subr.mxu0 0.0
    %81 = vmatpush1.msra.mxu0 %v57
    %82 = vmatprep.subr.mxu0 0.0
    %83 = vmatpush1.msra.mxu0 %v58
    %84 = vmatprep.subr.mxu0 0.0
    %85 = vmatpush1.msra.mxu0 %v59
    %86 = vmatprep.subr.mxu0 0.0
    %87 = vmatpush1.msra.mxu0 %v60
    %88 = vmatprep.subr.mxu0 0.0
    %89 = vmatpush1.msra.mxu0 %v61
    %90 = vmatprep.subr.mxu0 0.0
    %91 = vmatpush1.msra.mxu0 %v62
    %92 = vmatprep.subr.mxu0 0.0
    %93 = vmatpush1.msra.mxu0 %v63
    %94 = vmatprep.subr.mxu0 0.0
    %95 = vmatpush1.msra.mxu0 %v64
    %96 = vmatprep.subr.mxu0 0.0
    %97 = vmatpush1.msra.mxu0 %v65
    %98 = vmatprep.subr.mxu0 0.0
    %99 = vmatpush1.msra.mxu0 %v66
    %100 = vmatprep.subr.mxu0 0.0
    %101 = vmatpush1.msra.mxu0 %v67
    %102 = vmatprep.subr.mxu0 0.0
    %103 = vmatpush1.msra.mxu0 %v68
    %104 = vmatprep.subr.mxu0 0.0
    %105 = vmatpush1.msra.mxu0 %v69
    %106 = vmatprep.subr.mxu0 0.0
    %107 = vmatpush1.msra.mxu0 %v70
    %108 = vmatprep.subr.mxu0 0.0
    %109 = vmatpush1.msra.mxu0 %v71
    %110 = vmatprep.subr.mxu0 0.0
    %111 = vmatpush1.msra.mxu0 0.0
    %112 = vmatprep.subr.mxu0 0.0
    %113 = vmatpush1.msra.mxu0 0.0
    %114 = vmatprep.subr.mxu0 0.0
    %115 = vmatpush1.msra.mxu0 0.0
    %116 = vmatprep.subr.mxu0 0.0
    %117 = vmatpush1.msra.mxu0 0.0
    %118 = vmatprep.subr.mxu0 0.0
    %119 = vmatpush1.msra.mxu0 0.0
    %120 = vmatprep.subr.mxu0 0.0
    %121 = vmatpush1.msra.mxu0 0.0
    %122 = vmatprep.subr.mxu0 0.0
    %123 = vmatpush1.msra.mxu0 0.0
    %124 = vmatprep.subr.mxu0 0.0
    %125 = vmatpush1.msra.mxu0 0.0
    %126 = vmatprep.subr.mxu0 0.0
    %127 = vmatpush1.msra.mxu0 0.0
    %128 = vmatprep.subr.mxu0 0.0
    %129 = vmatpush1.msra.mxu0 0.0
    %130 = vmatprep.subr.mxu0 0.0
    %131 = vmatpush1.msra.mxu0 0.0
    %132 = vmatprep.subr.mxu0 0.0
    %133 = vmatpush1.msra.mxu0 0.0
    %134 = vmatprep.subr.mxu0 0.0
    %135 = vmatpush1.msra.mxu0 0.0
    %136 = vmatprep.subr.mxu0 0.0
    %137 = vmatpush1.msra.mxu0 0.0
    %138 = vmatprep.subr.mxu0 0.0
    %139 = vmatpush1.msra.mxu0 0.0
    %140 = vmatprep.subr.mxu0 0.0
    %141 = vmatpush1.msra.mxu0 0.0
    %142 = vmatprep.mubr.f32.mxu0 0.0
    %143 = vmatmul.mubr.f32.gmra.mrb[0].mxu0 %v55
    %v144 = vpop.f32.mrb[0].mxu0
    %v145 = vadd.f32 %v76, %v144
    %v146 = vpop.f32.mrb[0].mxu0
    %147 = vdwg.mxu0
    %v148 = vld [vmem:[#allocation6] sm:$0xff]
    %v149 = vld [vmem:[#allocation6 + $0x8] sm:$0xff]
    %v150 = vld [vmem:[#allocation6 + $0x10] sm:$0xff]
    %v151 = vld [vmem:[#allocation6 + $0x18] sm:$0xff]
    %v152 = vld [vmem:[#allocation6 + $0x20] sm:$0xff]
    %v153 = vld [vmem:[#allocation6 + $0x28] sm:$0xff]
    %v154 = vld [vmem:[#allocation6 + $0x30] sm:$0xff]
    %v155 = vld [vmem:[#allocation6 + $0x38] sm:$0xff]
    %v156 = vld [vmem:[#allocation6 + $0x40] sm:$0xff]
    %v157 = vld [vmem:[#allocation6 + $0x48] sm:$0xff]
    %v158 = vld [vmem:[#allocation6 + $0x50] sm:$0xff]
    %v159 = vld [vmem:[#allocation6 + $0x58] sm:$0xff]
    %v160 = vld [vmem:[#allocation6 + $0x60] sm:$0xff]
    %v161 = vld [vmem:[#allocation6 + $0x68] sm:$0xff]
    %v162 = vld [vmem:[#allocation6 + $0x70] sm:$0xff]
    %v163 = vld [vmem:[#allocation6 + $0x78] sm:$0xff]
    %164 = vmatprep.subr.mxu0 0.0
    %165 = vmatpush1.msra.mxu0 %v148
    %166 = vmatprep.subr.mxu0 0.0
    %167 = vmatpush1.msra.mxu0 %v149
    %168 = vmatprep.subr.mxu0 0.0
    %169 = vmatpush1.msra.mxu0 %v150
    %170 = vmatprep.subr.mxu0 0.0
    %171 = vmatpush1.msra.mxu0 %v151
    %172 = vmatprep.subr.mxu0 0.0
    %173 = vmatpush1.msra.mxu0 %v152
    %174 = vmatprep.subr.mxu0 0.0
    %175 = vmatpush1.msra.mxu0 %v153
    %176 = vmatprep.subr.mxu0 0.0
    %177 = vmatpush1.msra.mxu0 %v154
    %178 = vmatprep.subr.mxu0 0.0
    %179 = vmatpush1.msra.mxu0 %v155
    %180 = vmatprep.subr.mxu0 0.0
    %181 = vmatpush1.msra.mxu0 %v156
    %182 = vmatprep.subr.mxu0 0.0
    %183 = vmatpush1.msra.mxu0 %v157
    %184 = vmatprep.subr.mxu0 0.0
    %185 = vmatpush1.msra.mxu0 %v158
    %186 = vmatprep.subr.mxu0 0.0
    %187 = vmatpush1.msra.mxu0 %v159
    %188 = vmatprep.subr.mxu0 0.0
    %189 = vmatpush1.msra.mxu0 %v160
    %190 = vmatprep.subr.mxu0 0.0
    %191 = vmatpush1.msra.mxu0 %v161
    %192 = vmatprep.subr.mxu0 0.0
    %193 = vmatpush1.msra.mxu0 %v162
    %194 = vmatprep.subr.mxu0 0.0
    %195 = vmatpush1.msra.mxu0 %v163
    %196 = vmatprep.subr.mxu0 0.0
    %197 = vmatpush1.msra.mxu0 0.0
    %198 = vmatprep.subr.mxu0 0.0
    %199 = vmatpush1.msra.mxu0 0.0
    %200 = vmatprep.subr.mxu0 0.0
    %201 = vmatpush1.msra.mxu0 0.0
    %202 = vmatprep.subr.mxu0 0.0
    %203 = vmatpush1.msra.mxu0 0.0
    %204 = vmatprep.subr.mxu0 0.0
    %205 = vmatpush1.msra.mxu0 0.0
    %206 = vmatprep.subr.mxu0 0.0
    %207 = vmatpush1.msra.mxu0 0.0
    %208 = vmatprep.subr.mxu0 0.0
    %209 = vmatpush1.msra.mxu0 0.0
    %210 = vmatprep.subr.mxu0 0.0
    %211 = vmatpush1.msra.mxu0 0.0
    %212 = vmatprep.subr.mxu0 0.0
    %213 = vmatpush1.msra.mxu0 0.0
    %214 = vmatprep.subr.mxu0 0.0
    %215 = vmatpush1.msra.mxu0 0.0
    %216 = vmatprep.subr.mxu0 0.0
    %217 = vmatpush1.msra.mxu0 0.0
    %218 = vmatprep.subr.mxu0 0.0
    %219 = vmatpush1.msra.mxu0 0.0
    %220 = vmatprep.subr.mxu0 0.0
    %221 = vmatpush1.msra.mxu0 0.0
    %222 = vmatprep.subr.mxu0 0.0
    %223 = vmatpush1.msra.mxu0 0.0
    %224 = vmatprep.subr.mxu0 0.0
    %225 = vmatpush1.msra.mxu0 0.0
    %226 = vmatprep.subr.mxu0 0.0
    %227 = vmatpush1.msra.mxu0 0.0
    %228 = vmatprep.mubr.f32.mxu0 0.0
    %229 = vmatmul.mubr.f32.gmra.mrb[0].mxu0 0.0
    %v230 = vpop.f32.mrb[0].mxu0
    %v231 = vadd.f32 %v50, %v230
    %v232 = vpop.f32.mrb[0].mxu0
    %233 = vdwg.mxu0
    %v234 = vadd.f32 %v145, %v231
    %v235 = vxor.u32 %v234, 2147483648
    %v236 = vmul.f32 %v235, 1.442695
    %v237 = vpow.pop %v236
    %v238 = vadd.f32 %v237, 1.0
    %v239 = vrcp.pop %v238
    %v240 = vmul.f32 1.0, %v239
    %241 = vrot.lane.b32.xlu0 %v240, 64
    %v242 = vpop.permute.xlu0 %241
    %v243 = vmul.f32 %v242, %v231
    %v244 = vadd.f32 %v145, %v243
    %v245 = vtanh.pop %v244
    %246 = vrot.lane.b32.xlu0 %v245, 64
    %v247 = vpop.permute.xlu0 %246
    %248 = vrot.lane.b32.xlu0 %v240, 96
    %v249 = vpop.permute.xlu0 %248
    %v250 = vsub.f32 0.0, %v247
    %v251 = vmul.f32 %v249, %v250
    %v252 = vadd.f32 %v247, %v251
    %253 = vmatprep.subr.mxu0 0.0
    %254 = vmatpush1.msra.mxu0 %v148
    %255 = vmatprep.subr.mxu0 0.0
    %256 = vmatpush1.msra.mxu0 %v149
    %257 = vmatprep.subr.mxu0 0.0
    %258 = vmatpush1.msra.mxu0 %v150
    %259 = vmatprep.subr.mxu0 0.0
    %260 = vmatpush1.msra.mxu0 %v151
    %261 = vmatprep.subr.mxu0 0.0
    %262 = vmatpush1.msra.mxu0 %v152
    %263 = vmatprep.subr.mxu0 0.0
    %264 = vmatpush1.msra.mxu0 %v153
    %265 = vmatprep.subr.mxu0 0.0
    %266 = vmatpush1.msra.mxu0 %v154
    %267 = vmatprep.subr.mxu0 0.0
    %268 = vmatpush1.msra.mxu0 %v155
    %269 = vmatprep.subr.mxu0 0.0
    %270 = vmatpush1.msra.mxu0 %v156
    %271 = vmatprep.subr.mxu0 0.0
    %272 = vmatpush1.msra.mxu0 %v157
    %273 = vmatprep.subr.mxu0 0.0
    %274 = vmatpush1.msra.mxu0 %v158
    %275 = vmatprep.subr.mxu0 0.0
    %276 = vmatpush1.msra.mxu0 %v159
    %277 = vmatprep.subr.mxu0 0.0
    %278 = vmatpush1.msra.mxu0 %v160
    %279 = vmatprep.subr.mxu0 0.0
    %280 = vmatpush1.msra.mxu0 %v161
    %281 = vmatprep.subr.mxu0 0.0
    %282 = vmatpush1.msra.mxu0 %v162
    %283 = vmatprep.subr.mxu0 0.0
    %284 = vmatpush1.msra.mxu0 %v163
    %285 = vmatprep.subr.mxu0 0.0
    %286 = vmatpush1.msra.mxu0 0.0
    %287 = vmatprep.subr.mxu0 0.0
    %288 = vmatpush1.msra.mxu0 0.0
    %289 = vmatprep.subr.mxu0 0.0
    %290 = vmatpush1.msra.mxu0 0.0
    %291 = vmatprep.subr.mxu0 0.0
    %292 = vmatpush1.msra.mxu0 0.0
    %293 = vmatprep.subr.mxu0 0.0
    %294 = vmatpush1.msra.mxu0 0.0
    %295 = vmatprep.subr.mxu0 0.0
    %296 = vmatpush1.msra.mxu0 0.0
    %297 = vmatprep.subr.mxu0 0.0
    %298 = vmatpush1.msra.mxu0 0.0
    %299 = vmatprep.subr.mxu0 0.0
    %300 = vmatpush1.msra.mxu0 0.0
    %301 = vmatprep.subr.mxu0 0.0
    %302 = vmatpush1.msra.mxu0 0.0
    %303 = vmatprep.subr.mxu0 0.0
    %304 = vmatpush1.msra.mxu0 0.0
    %305 = vmatprep.subr.mxu0 0.0
    %306 = vmatpush1.msra.mxu0 0.0
    %307 = vmatprep.subr.mxu0 0.0
    %308 = vmatpush1.msra.mxu0 0.0
    %309 = vmatprep.subr.mxu0 0.0
    %310 = vmatpush1.msra.mxu0 0.0
    %311 = vmatprep.subr.mxu0 0.0
    %312 = vmatpush1.msra.mxu0 0.0
    %313 = vmatprep.subr.mxu0 0.0
    %314 = vmatpush1.msra.mxu0 0.0
    %315 = vmatprep.subr.mxu0 0.0
    %316 = vmatpush1.msra.mxu0 0.0
    %317 = vmatprep.mubr.f32.mxu0 0.0
    %318 = vmatmul.mubr.f32.gmra.mrb[0].mxu0 %v252
    %v319 = vpop.f32.mrb[0].mxu0
    %v320 = vadd.f32 %v50, %v319
    %v321 = vpop.f32.mrb[0].mxu0
    %322 = vdwg.mxu0
    %v324 = vrot.slane %v320, 7
    %v326 = vadd.f32 %v145, %v324
    %v327 = vxor.u32 %v326, 2147483648
    %v328 = vmul.f32 %v327, 1.442695
    %v329 = vpow.pop %v328
    %v330 = vadd.f32 %v329, 1.0
    %v331 = vrcp.pop %v330
    %v332 = vmul.f32 1.0, %v331
    %v334 = vrot.slane %v332, 1
    %336 = vrot.lane.b32.xlu0 %v334, 64
    %v337 = vpop.permute.xlu0 %336
    %v338 = vmul.f32 %v337, %v320
    %v340 = vrot.slane %v338, 7
    %v342 = vadd.f32 %v145, %v340
    %v343 = vtanh.pop %v342
    %v345 = vrot.slane %v343, 1
    %347 = vrot.lane.b32.xlu0 %v345, 64
    %v348 = vpop.permute.xlu0 %347
    %349 = vrot.lane.b32.xlu0 %v334, 96
    %v350 = vpop.permute.xlu0 %349
    %v351 = vsub.f32 %v252, %v348
    %v352 = vmul.f32 %v350, %v351
    %v353 = vadd.f32 %v348, %v352
    %354 = vmatprep.subr.mxu0 0.0
    %355 = vmatpush1.msra.mxu0 %v148
    %356 = vmatprep.subr.mxu0 0.0
    %357 = vmatpush1.msra.mxu0 %v149
    %358 = vmatprep.subr.mxu0 0.0
    %359 = vmatpush1.msra.mxu0 %v150
    %360 = vmatprep.subr.mxu0 0.0
    %361 = vmatpush1.msra.mxu0 %v151
    %362 = vmatprep.subr.mxu0 0.0
    %363 = vmatpush1.msra.mxu0 %v152
    %364 = vmatprep.subr.mxu0 0.0
    %365 = vmatpush1.msra.mxu0 %v153
    %366 = vmatprep.subr.mxu0 0.0
    %367 = vmatpush1.msra.mxu0 %v154
    %368 = vmatprep.subr.mxu0 0.0
    %369 = vmatpush1.msra.mxu0 %v155
    %370 = vmatprep.subr.mxu0 0.0
    %371 = vmatpush1.msra.mxu0 %v156
    %372 = vmatprep.subr.mxu0 0.0
    %373 = vmatpush1.msra.mxu0 %v157
    %374 = vmatprep.subr.mxu0 0.0
    %375 = vmatpush1.msra.mxu0 %v158
    %376 = vmatprep.subr.mxu0 0.0
    %377 = vmatpush1.msra.mxu0 %v159
    %378 = vmatprep.subr.mxu0 0.0
    %379 = vmatpush1.msra.mxu0 %v160
    %380 = vmatprep.subr.mxu0 0.0
    %381 = vmatpush1.msra.mxu0 %v161
    %382 = vmatprep.subr.mxu0 0.0
    %383 = vmatpush1.msra.mxu0 %v162
    %384 = vmatprep.subr.mxu0 0.0
    %385 = vmatpush1.msra.mxu0 %v163
    %386 = vmatprep.subr.mxu0 0.0
    %387 = vmatpush1.msra.mxu0 0.0
    %388 = vmatprep.subr.mxu0 0.0
    %389 = vmatpush1.msra.mxu0 0.0
    %390 = vmatprep.subr.mxu0 0.0
    %391 = vmatpush1.msra.mxu0 0.0
    %392 = vmatprep.subr.mxu0 0.0
    %393 = vmatpush1.msra.mxu0 0.0
    %394 = vmatprep.subr.mxu0 0.0
    %395 = vmatpush1.msra.mxu0 0.0
    %396 = vmatprep.subr.mxu0 0.0
    %397 = vmatpush1.msra.mxu0 0.0
    %398 = vmatprep.subr.mxu0 0.0
    %399 = vmatpush1.msra.mxu0 0.0
    %400 = vmatprep.subr.mxu0 0.0
    %401 = vmatpush1.msra.mxu0 0.0
    %402 = vmatprep.subr.mxu0 0.0
    %403 = vmatpush1.msra.mxu0 0.0
    %404 = vmatprep.subr.mxu0 0.0
    %405 = vmatpush1.msra.mxu0 0.0
    %406 = vmatprep.subr.mxu0 0.0
    %407 = vmatpush1.msra.mxu0 0.0
    %408 = vmatprep.subr.mxu0 0.0
    %409 = vmatpush1.msra.mxu0 0.0
    %410 = vmatprep.subr.mxu0 0.0
    %411 = vmatpush1.msra.mxu0 0.0
    %412 = vmatprep.subr.mxu0 0.0
    %413 = vmatpush1.msra.mxu0 0.0
    %414 = vmatprep.subr.mxu0 0.0
    %415 = vmatpush1.msra.mxu0 0.0
    %416 = vmatprep.subr.mxu0 0.0
    %417 = vmatpush1.msra.mxu0 0.0
    %418 = vmatprep.mubr.f32.mxu0 0.0
    %419 = vmatmul.mubr.f32.gmra.mrb[0].mxu0 %v353
    %v420 = vpop.f32.mrb[0].mxu0
    %v421 = vadd.f32 %v50, %v420
    %v422 = vpop.f32.mrb[0].mxu0
    %423 = vdwg.mxu0
    %v425 = vrot.slane %v421, 6
    %v427 = vadd.f32 %v145, %v425
    %v428 = vxor.u32 %v427, 2147483648
    %v429 = vmul.f32 %v428, 1.442695
    %v430 = vpow.pop %v429
    %v431 = vadd.f32 %v430, 1.0
    %v432 = vrcp.pop %v431
    %v433 = vmul.f32 1.0, %v432
    %v435 = vrot.slane %v433, 2
    %437 = vrot.lane.b32.xlu0 %v435, 64
    %v438 = vpop.permute.xlu0 %437
    %v439 = vmul.f32 %v438, %v421
    %v441 = vrot.slane %v439, 6
    %v443 = vadd.f32 %v145, %v441
    %v444 = vtanh.pop %v443
    %v446 = vrot.slane %v444, 2
    %448 = vrot.lane.b32.xlu0 %v446, 64
    %v449 = vpop.permute.xlu0 %448
    %450 = vrot.lane.b32.xlu0 %v435, 96
    %v451 = vpop.permute.xlu0 %450
    %v452 = vsub.f32 %v353, %v449
    %v453 = vmul.f32 %v451, %v452
    %v454 = vadd.f32 %v449, %v453
    %455 = vmatprep.subr.mxu0 0.0
    %456 = vmatpush1.msra.mxu0 %v148
    %457 = vmatprep.subr.mxu0 0.0
    %458 = vmatpush1.msra.mxu0 %v149
    %459 = vmatprep.subr.mxu0 0.0
    %460 = vmatpush1.msra.mxu0 %v150
    %461 = vmatprep.subr.mxu0 0.0
    %462 = vmatpush1.msra.mxu0 %v151
    %463 = vmatprep.subr.mxu0 0.0
    %464 = vmatpush1.msra.mxu0 %v152
    %465 = vmatprep.subr.mxu0 0.0
    %466 = vmatpush1.msra.mxu0 %v153
    %467 = vmatprep.subr.mxu0 0.0
    %468 = vmatpush1.msra.mxu0 %v154
    %469 = vmatprep.subr.mxu0 0.0
    %470 = vmatpush1.msra.mxu0 %v155
    %471 = vmatprep.subr.mxu0 0.0
    %472 = vmatpush1.msra.mxu0 %v156
    %473 = vmatprep.subr.mxu0 0.0
    %474 = vmatpush1.msra.mxu0 %v157
    %475 = vmatprep.subr.mxu0 0.0
    %476 = vmatpush1.msra.mxu0 %v158
    %477 = vmatprep.subr.mxu0 0.0
    %478 = vmatpush1.msra.mxu0 %v159
    %479 = vmatprep.subr.mxu0 0.0
    %480 = vmatpush1.msra.mxu0 %v160
    %481 = vmatprep.subr.mxu0 0.0
    %482 = vmatpush1.msra.mxu0 %v161
    %483 = vmatprep.subr.mxu0 0.0
    %484 = vmatpush1.msra.mxu0 %v162
    %485 = vmatprep.subr.mxu0 0.0
    %486 = vmatpush1.msra.mxu0 %v163
    %487 = vmatprep.subr.mxu0 0.0
    %488 = vmatpush1.msra.mxu0 0.0
    %489 = vmatprep.subr.mxu0 0.0
    %490 = vmatpush1.msra.mxu0 0.0
    %491 = vmatprep.subr.mxu0 0.0
    %492 = vmatpush1.msra.mxu0 0.0
    %493 = vmatprep.subr.mxu0 0.0
    %494 = vmatpush1.msra.mxu0 0.0
    %495 = vmatprep.subr.mxu0 0.0
    %496 = vmatpush1.msra.mxu0 0.0
    %497 = vmatprep.subr.mxu0 0.0
    %498 = vmatpush1.msra.mxu0 0.0
    %499 = vmatprep.subr.mxu0 0.0
    %500 = vmatpush1.msra.mxu0 0.0
    %501 = vmatprep.subr.mxu0 0.0
    %502 = vmatpush1.msra.mxu0 0.0
    %503 = vmatprep.subr.mxu0 0.0
    %504 = vmatpush1.msra.mxu0 0.0
    %505 = vmatprep.subr.mxu0 0.0
    %506 = vmatpush1.msra.mxu0 0.0
    %507 = vmatprep.subr.mxu0 0.0
    %508 = vmatpush1.msra.mxu0 0.0
    %509 = vmatprep.subr.mxu0 0.0
    %510 = vmatpush1.msra.mxu0 0.0
    %511 = vmatprep.subr.mxu0 0.0
    %512 = vmatpush1.msra.mxu0 0.0
    %513 = vmatprep.subr.mxu0 0.0
    %514 = vmatpush1.msra.mxu0 0.0
    %515 = vmatprep.subr.mxu0 0.0
    %516 = vmatpush1.msra.mxu0 0.0
    %517 = vmatprep.subr.mxu0 0.0
    %518 = vmatpush1.msra.mxu0 0.0
    %519 = vmatprep.mubr.f32.mxu0 0.0
    %520 = vmatmul.mubr.f32.gmra.mrb[0].mxu0 %v454
    %v521 = vpop.f32.mrb[0].mxu0
    %v522 = vadd.f32 %v50, %v521
    %v523 = vpop.f32.mrb[0].mxu0
    %524 = vdwg.mxu0
    %v526 = vrot.slane %v522, 5
    %v528 = vadd.f32 %v145, %v526
    %v529 = vxor.u32 %v528, 2147483648
    %v530 = vmul.f32 %v529, 1.442695
    %v531 = vpow.pop %v530
    %v532 = vadd.f32 %v531, 1.0
    %v533 = vrcp.pop %v532
    %v534 = vmul.f32 1.0, %v533
    %v536 = vrot.slane %v534, 3
    %538 = vrot.lane.b32.xlu0 %v536, 64
    %v539 = vpop.permute.xlu0 %538
    %v540 = vmul.f32 %v539, %v522
    %v542 = vrot.slane %v540, 5
    %v544 = vadd.f32 %v145, %v542
    %v545 = vtanh.pop %v544
    %v547 = vrot.slane %v545, 3
    %549 = vrot.lane.b32.xlu0 %v547, 64
    %v550 = vpop.permute.xlu0 %549
    %551 = vrot.lane.b32.xlu0 %v536, 96
    %v552 = vpop.permute.xlu0 %551
    %v553 = vsub.f32 %v454, %v550
    %v554 = vmul.f32 %v552, %v553
    %v555 = vadd.f32 %v550, %v554
    %556 = vmatprep.subr.mxu0 0.0
    %557 = vmatpush1.msra.mxu0 %v148
    %558 = vmatprep.subr.mxu0 0.0
    %559 = vmatpush1.msra.mxu0 %v149
    %560 = vmatprep.subr.mxu0 0.0
    %561 = vmatpush1.msra.mxu0 %v150
    %562 = vmatprep.subr.mxu0 0.0
    %563 = vmatpush1.msra.mxu0 %v151
    %564 = vmatprep.subr.mxu0 0.0
    %565 = vmatpush1.msra.mxu0 %v152
    %566 = vmatprep.subr.mxu0 0.0
    %567 = vmatpush1.msra.mxu0 %v153
    %568 = vmatprep.subr.mxu0 0.0
    %569 = vmatpush1.msra.mxu0 %v154
    %570 = vmatprep.subr.mxu0 0.0
    %571 = vmatpush1.msra.mxu0 %v155
    %572 = vmatprep.subr.mxu0 0.0
    %573 = vmatpush1.msra.mxu0 %v156
    %574 = vmatprep.subr.mxu0 0.0
    %575 = vmatpush1.msra.mxu0 %v157
    %576 = vmatprep.subr.mxu0 0.0
    %577 = vmatpush1.msra.mxu0 %v158
    %578 = vmatprep.subr.mxu0 0.0
    %579 = vmatpush1.msra.mxu0 %v159
    %580 = vmatprep.subr.mxu0 0.0
    %581 = vmatpush1.msra.mxu0 %v160
    %582 = vmatprep.subr.mxu0 0.0
    %583 = vmatpush1.msra.mxu0 %v161
    %584 = vmatprep.subr.mxu0 0.0
    %585 = vmatpush1.msra.mxu0 %v162
    %586 = vmatprep.subr.mxu0 0.0
    %587 = vmatpush1.msra.mxu0 %v163
    %588 = vmatprep.subr.mxu0 0.0
    %589 = vmatpush1.msra.mxu0 0.0
    %590 = vmatprep.subr.mxu0 0.0
    %591 = vmatpush1.msra.mxu0 0.0
    %592 = vmatprep.subr.mxu0 0.0
    %593 = vmatpush1.msra.mxu0 0.0
    %594 = vmatprep.subr.mxu0 0.0
    %595 = vmatpush1.msra.mxu0 0.0
    %596 = vmatprep.subr.mxu0 0.0
    %597 = vmatpush1.msra.mxu0 0.0
    %598 = vmatprep.subr.mxu0 0.0
    %599 = vmatpush1.msra.mxu0 0.0
    %600 = vmatprep.subr.mxu0 0.0
    %601 = vmatpush1.msra.mxu0 0.0
    %602 = vmatprep.subr.mxu0 0.0
    %603 = vmatpush1.msra.mxu0 0.0
    %604 = vmatprep.subr.mxu0 0.0
    %605 = vmatpush1.msra.mxu0 0.0
    %606 = vmatprep.subr.mxu0 0.0
    %607 = vmatpush1.msra.mxu0 0.0
    %608 = vmatprep.subr.mxu0 0.0
    %609 = vmatpush1.msra.mxu0 0.0
    %610 = vmatprep.subr.mxu0 0.0
    %611 = vmatpush1.msra.mxu0 0.0
    %612 = vmatprep.subr.mxu0 0.0
    %613 = vmatpush1.msra.mxu0 0.0
    %614 = vmatprep.subr.mxu0 0.0
    %615 = vmatpush1.msra.mxu0 0.0
    %616 = vmatprep.subr.mxu0 0.0
    %617 = vmatpush1.msra.mxu0 0.0
    %618 = vmatprep.subr.mxu0 0.0
    %619 = vmatpush1.msra.mxu0 0.0
    %620 = vmatprep.mubr.f32.mxu0 0.0
    %621 = vmatmul.mubr.f32.gmra.mrb[0].mxu0 %v555
    %v622 = vpop.f32.mrb[0].mxu0
    %v623 = vadd.f32 %v50, %v622
    %v624 = vpop.f32.mrb[0].mxu0
    %625 = vdwg.mxu0
    %v627 = vrot.slane %v623, 4
    %v629 = vadd.f32 %v145, %v627
    %v630 = vxor.u32 %v629, 2147483648
    %v631 = vmul.f32 %v630, 1.442695
    %v632 = vpow.pop %v631
    %v633 = vadd.f32 %v632, 1.0
    %v634 = vrcp.pop %v633
    %v635 = vmul.f32 1.0, %v634
    %v637 = vrot.slane %v635, 4
    %639 = vrot.lane.b32.xlu0 %v637, 64
    %v640 = vpop.permute.xlu0 %639
    %v641 = vmul.f32 %v640, %v623
    %v643 = vrot.slane %v641, 4
    %v645 = vadd.f32 %v145, %v643
    %v646 = vtanh.pop %v645
    %v648 = vrot.slane %v646, 4
    %650 = vrot.lane.b32.xlu0 %v648, 64
    %v651 = vpop.permute.xlu0 %650
    %652 = vrot.lane.b32.xlu0 %v637, 96
    %v653 = vpop.permute.xlu0 %652
    %v654 = vsub.f32 %v555, %v651
    %v655 = vmul.f32 %v653, %v654
    %v656 = vadd.f32 %v651, %v655
    %657 = vmatprep.subr.mxu0 0.0
    %658 = vmatpush1.msra.mxu0 %v148
    %659 = vmatprep.subr.mxu0 0.0
    %660 = vmatpush1.msra.mxu0 %v149
    %661 = vmatprep.subr.mxu0 0.0
    %662 = vmatpush1.msra.mxu0 %v150
    %663 = vmatprep.subr.mxu0 0.0
    %664 = vmatpush1.msra.mxu0 %v151
    %665 = vmatprep.subr.mxu0 0.0
    %666 = vmatpush1.msra.mxu0 %v152
    %667 = vmatprep.subr.mxu0 0.0
    %668 = vmatpush1.msra.mxu0 %v153
    %669 = vmatprep.subr.mxu0 0.0
    %670 = vmatpush1.msra.mxu0 %v154
    %671 = vmatprep.subr.mxu0 0.0
    %672 = vmatpush1.msra.mxu0 %v155
    %673 = vmatprep.subr.mxu0 0.0
    %674 = vmatpush1.msra.mxu0 %v156
    %675 = vmatprep.subr.mxu0 0.0
    %676 = vmatpush1.msra.mxu0 %v157
    %677 = vmatprep.subr.mxu0 0.0
    %678 = vmatpush1.msra.mxu0 %v158
    %679 = vmatprep.subr.mxu0 0.0
    %680 = vmatpush1.msra.mxu0 %v159
    %681 = vmatprep.subr.mxu0 0.0
    %682 = vmatpush1.msra.mxu0 %v160
    %683 = vmatprep.subr.mxu0 0.0
    %684 = vmatpush1.msra.mxu0 %v161
    %685 = vmatprep.subr.mxu0 0.0
    %686 = vmatpush1.msra.mxu0 %v162
    %687 = vmatprep.subr.mxu0 0.0
    %688 = vmatpush1.msra.mxu0 %v163
    %689 = vmatprep.subr.mxu0 0.0
    %690 = vmatpush1.msra.mxu0 0.0
    %691 = vmatprep.subr.mxu0 0.0
    %692 = vmatpush1.msra.mxu0 0.0
    %693 = vmatprep.subr.mxu0 0.0
    %694 = vmatpush1.msra.mxu0 0.0
    %695 = vmatprep.subr.mxu0 0.0
    %696 = vmatpush1.msra.mxu0 0.0
    %697 = vmatprep.subr.mxu0 0.0
    %698 = vmatpush1.msra.mxu0 0.0
    %699 = vmatprep.subr.mxu0 0.0
    %700 = vmatpush1.msra.mxu0 0.0
    %701 = vmatprep.subr.mxu0 0.0
    %702 = vmatpush1.msra.mxu0 0.0
    %703 = vmatprep.subr.mxu0 0.0
    %704 = vmatpush1.msra.mxu0 0.0
    %705 = vmatprep.subr.mxu0 0.0
    %706 = vmatpush1.msra.mxu0 0.0
    %707 = vmatprep.subr.mxu0 0.0
    %708 = vmatpush1.msra.mxu0 0.0
    %709 = vmatprep.subr.mxu0 0.0
    %710 = vmatpush1.msra.mxu0 0.0
    %711 = vmatprep.subr.mxu0 0.0
    %712 = vmatpush1.msra.mxu0 0.0
    %713 = vmatprep.subr.mxu0 0.0
    %714 = vmatpush1.msra.mxu0 0.0
    %715 = vmatprep.subr.mxu0 0.0
    %716 = vmatpush1.msra.mxu0 0.0
    %717 = vmatprep.subr.mxu0 0.0
    %718 = vmatpush1.msra.mxu0 0.0
    %719 = vmatprep.subr.mxu0 0.0
    %720 = vmatpush1.msra.mxu0 0.0
    %721 = vmatprep.mubr.f32.mxu0 0.0
    %722 = vmatmul.mubr.f32.gmra.mrb[0].mxu0 %v656
    %v723 = vpop.f32.mrb[0].mxu0
    %v724 = vadd.f32 %v50, %v723
    %v725 = vpop.f32.mrb[0].mxu0
    %726 = vdwg.mxu0
    %v728 = vrot.slane %v724, 3
    %v730 = vadd.f32 %v145, %v728
    %v731 = vxor.u32 %v730, 2147483648
    %v732 = vmul.f32 %v731, 1.442695
    %v733 = vpow.pop %v732
    %v734 = vadd.f32 %v733, 1.0
    %v735 = vrcp.pop %v734
    %v736 = vmul.f32 1.0, %v735
    %v738 = vrot.slane %v736, 5
    %740 = vrot.lane.b32.xlu0 %v738, 64
    %v741 = vpop.permute.xlu0 %740
    %v742 = vmul.f32 %v741, %v724
    %v744 = vrot.slane %v742, 3
    %v746 = vadd.f32 %v145, %v744
    %v747 = vtanh.pop %v746
    %v749 = vrot.slane %v747, 5
    %751 = vrot.lane.b32.xlu0 %v749, 64
    %v752 = vpop.permute.xlu0 %751
    %753 = vrot.lane.b32.xlu0 %v738, 96
    %v754 = vpop.permute.xlu0 %753
    %v755 = vsub.f32 %v656, %v752
    %v756 = vmul.f32 %v754, %v755
    %v757 = vadd.f32 %v752, %v756
    %758 = vmatprep.subr.mxu0 0.0
    %759 = vmatpush1.msra.mxu0 %v148
    %760 = vmatprep.subr.mxu0 0.0
    %761 = vmatpush1.msra.mxu0 %v149
    %762 = vmatprep.subr.mxu0 0.0
    %763 = vmatpush1.msra.mxu0 %v150
    %764 = vmatprep.subr.mxu0 0.0
    %765 = vmatpush1.msra.mxu0 %v151
    %766 = vmatprep.subr.mxu0 0.0
    %767 = vmatpush1.msra.mxu0 %v152
    %768 = vmatprep.subr.mxu0 0.0
    %769 = vmatpush1.msra.mxu0 %v153
    %770 = vmatprep.subr.mxu0 0.0
    %771 = vmatpush1.msra.mxu0 %v154
    %772 = vmatprep.subr.mxu0 0.0
    %773 = vmatpush1.msra.mxu0 %v155
    %774 = vmatprep.subr.mxu0 0.0
    %775 = vmatpush1.msra.mxu0 %v156
    %776 = vmatprep.subr.mxu0 0.0
    %777 = vmatpush1.msra.mxu0 %v157
    %778 = vmatprep.subr.mxu0 0.0
    %779 = vmatpush1.msra.mxu0 %v158
    %780 = vmatprep.subr.mxu0 0.0
    %781 = vmatpush1.msra.mxu0 %v159
    %782 = vmatprep.subr.mxu0 0.0
    %783 = vmatpush1.msra.mxu0 %v160
    %784 = vmatprep.subr.mxu0 0.0
    %785 = vmatpush1.msra.mxu0 %v161
    %786 = vmatprep.subr.mxu0 0.0
    %787 = vmatpush1.msra.mxu0 %v162
    %788 = vmatprep.subr.mxu0 0.0
    %789 = vmatpush1.msra.mxu0 %v163
    %790 = vmatprep.subr.mxu0 0.0
    %791 = vmatpush1.msra.mxu0 0.0
    %792 = vmatprep.subr.mxu0 0.0
    %793 = vmatpush1.msra.mxu0 0.0
    %794 = vmatprep.subr.mxu0 0.0
    %795 = vmatpush1.msra.mxu0 0.0
    %796 = vmatprep.subr.mxu0 0.0
    %797 = vmatpush1.msra.mxu0 0.0
    %798 = vmatprep.subr.mxu0 0.0
    %799 = vmatpush1.msra.mxu0 0.0
    %800 = vmatprep.subr.mxu0 0.0
    %801 = vmatpush1.msra.mxu0 0.0
    %802 = vmatprep.subr.mxu0 0.0
    %803 = vmatpush1.msra.mxu0 0.0
    %804 = vmatprep.subr.mxu0 0.0
    %805 = vmatpush1.msra.mxu0 0.0
    %806 = vmatprep.subr.mxu0 0.0
    %807 = vmatpush1.msra.mxu0 0.0
    %808 = vmatprep.subr.mxu0 0.0
    %809 = vmatpush1.msra.mxu0 0.0
    %810 = vmatprep.subr.mxu0 0.0
    %811 = vmatpush1.msra.mxu0 0.0
    %812 = vmatprep.subr.mxu0 0.0
    %813 = vmatpush1.msra.mxu0 0.0
    %814 = vmatprep.subr.mxu0 0.0
    %815 = vmatpush1.msra.mxu0 0.0
    %816 = vmatprep.subr.mxu0 0.0
    %817 = vmatpush1.msra.mxu0 0.0
    %818 = vmatprep.subr.mxu0 0.0
    %819 = vmatpush1.msra.mxu0 0.0
    %820 = vmatprep.subr.mxu0 0.0
    %821 = vmatpush1.msra.mxu0 0.0
    %822 = vmatprep.mubr.f32.mxu0 0.0
    %823 = vmatmul.mubr.f32.gmra.mrb[0].mxu0 %v757
    %v824 = vpop.f32.mrb[0].mxu0
    %v825 = vadd.f32 %v50, %v824
    %v826 = vpop.f32.mrb[0].mxu0
    %827 = vdwg.mxu0
    %v829 = vrot.slane %v825, 2
    %v831 = vadd.f32 %v145, %v829
    %v832 = vxor.u32 %v831, 2147483648
    %v833 = vmul.f32 %v832, 1.442695
    %v834 = vpow.pop %v833
    %v835 = vadd.f32 %v834, 1.0
    %v836 = vrcp.pop %v835
    %v837 = vmul.f32 1.0, %v836
    %v839 = vrot.slane %v837, 6
    %841 = vrot.lane.b32.xlu0 %v839, 64
    %v842 = vpop.permute.xlu0 %841
    %v843 = vmul.f32 %v842, %v825
    %v845 = vrot.slane %v843, 2
    %v847 = vadd.f32 %v145, %v845
    %v848 = vtanh.pop %v847
    %v850 = vrot.slane %v848, 6
    %852 = vrot.lane.b32.xlu0 %v850, 64
    %v853 = vpop.permute.xlu0 %852
    %854 = vrot.lane.b32.xlu0 %v839, 96
    %v855 = vpop.permute.xlu0 %854
    %v856 = vsub.f32 %v757, %v853
    %v857 = vmul.f32 %v855, %v856
    %v858 = vadd.f32 %v853, %v857
    %859 = vmatprep.subr.mxu0 0.0
    %860 = vmatpush1.msra.mxu0 %v148
    %861 = vmatprep.subr.mxu0 0.0
    %862 = vmatpush1.msra.mxu0 %v149
    %863 = vmatprep.subr.mxu0 0.0
    %864 = vmatpush1.msra.mxu0 %v150
    %865 = vmatprep.subr.mxu0 0.0
    %866 = vmatpush1.msra.mxu0 %v151
    %867 = vmatprep.subr.mxu0 0.0
    %868 = vmatpush1.msra.mxu0 %v152
    %869 = vmatprep.subr.mxu0 0.0
    %870 = vmatpush1.msra.mxu0 %v153
    %871 = vmatprep.subr.mxu0 0.0
    %872 = vmatpush1.msra.mxu0 %v154
    %873 = vmatprep.subr.mxu0 0.0
    %874 = vmatpush1.msra.mxu0 %v155
    %875 = vmatprep.subr.mxu0 0.0
    %876 = vmatpush1.msra.mxu0 %v156
    %877 = vmatprep.subr.mxu0 0.0
    %878 = vmatpush1.msra.mxu0 %v157
    %879 = vmatprep.subr.mxu0 0.0
    %880 = vmatpush1.msra.mxu0 %v158
    %881 = vmatprep.subr.mxu0 0.0
    %882 = vmatpush1.msra.mxu0 %v159
    %883 = vmatprep.subr.mxu0 0.0
    %884 = vmatpush1.msra.mxu0 %v160
    %885 = vmatprep.subr.mxu0 0.0
    %886 = vmatpush1.msra.mxu0 %v161
    %887 = vmatprep.subr.mxu0 0.0
    %888 = vmatpush1.msra.mxu0 %v162
    %889 = vmatprep.subr.mxu0 0.0
    %890 = vmatpush1.msra.mxu0 %v163
    %891 = vmatprep.subr.mxu0 0.0
    %892 = vmatpush1.msra.mxu0 0.0
    %893 = vmatprep.subr.mxu0 0.0
    %894 = vmatpush1.msra.mxu0 0.0
    %895 = vmatprep.subr.mxu0 0.0
    %896 = vmatpush1.msra.mxu0 0.0
    %897 = vmatprep.subr.mxu0 0.0
    %898 = vmatpush1.msra.mxu0 0.0
    %899 = vmatprep.subr.mxu0 0.0
    %900 = vmatpush1.msra.mxu0 0.0
    %901 = vmatprep.subr.mxu0 0.0
    %902 = vmatpush1.msra.mxu0 0.0
    %903 = vmatprep.subr.mxu0 0.0
    %904 = vmatpush1.msra.mxu0 0.0
    %905 = vmatprep.subr.mxu0 0.0
    %906 = vmatpush1.msra.mxu0 0.0
    %907 = vmatprep.subr.mxu0 0.0
    %908 = vmatpush1.msra.mxu0 0.0
    %909 = vmatprep.subr.mxu0 0.0
    %910 = vmatpush1.msra.mxu0 0.0
    %911 = vmatprep.subr.mxu0 0.0
    %912 = vmatpush1.msra.mxu0 0.0
    %913 = vmatprep.subr.mxu0 0.0
    %914 = vmatpush1.msra.mxu0 0.0
    %915 = vmatprep.subr.mxu0 0.0
    %916 = vmatpush1.msra.mxu0 0.0
    %917 = vmatprep.subr.mxu0 0.0
    %918 = vmatpush1.msra.mxu0 0.0
    %919 = vmatprep.subr.mxu0 0.0
    %920 = vmatpush1.msra.mxu0 0.0
    %921 = vmatprep.subr.mxu0 0.0
    %922 = vmatpush1.msra.mxu0 0.0
    %923 = vmatprep.mubr.f32.mxu0 0.0
    %924 = vmatmul.mubr.f32.gmra.mrb[0].mxu0 %v858
    %v925 = vpop.f32.mrb[0].mxu0
    %v926 = vadd.f32 %v50, %v925
    %v927 = vpop.f32.mrb[0].mxu0
    %928 = vdwg.mxu0
    %v930 = vrot.slane %v926, 1
    %v932 = vadd.f32 %v145, %v930
    %v933 = vxor.u32 %v932, 2147483648
    %v934 = vmul.f32 %v933, 1.442695
    %v935 = vpow.pop %v934
    %v936 = vadd.f32 %v935, 1.0
    %v937 = vrcp.pop %v936
    %v938 = vmul.f32 1.0, %v937
    %v940 = vrot.slane %v938, 7
    %942 = vrot.lane.b32.xlu0 %v940, 64
    %v943 = vpop.permute.xlu0 %942
    %v944 = vmul.f32 %v943, %v926
    %v946 = vrot.slane %v944, 1
    %v948 = vadd.f32 %v145, %v946
    %v949 = vtanh.pop %v948
    %v951 = vrot.slane %v949, 7
    %953 = vrot.lane.b32.xlu0 %v951, 64
    %v954 = vpop.permute.xlu0 %953
    %955 = vrot.lane.b32.xlu0 %v940, 96
    %v956 = vpop.permute.xlu0 %955
    %v957 = vsub.f32 %v858, %v954
    %v958 = vmul.f32 %v956, %v957
    %v959 = vadd.f32 %v954, %v958
    %s960 = scalar_lea.vmem %s0, 8
    %v961 = vld [vmem:[%s960] sm:$0xff]
    %962 = vst.msk [vmem:[#allocation2] sm:$0xff] %vm53, %v961
    %v963 = vld [vmem:[#allocation2] sm:$0xff]
    %v964 = vld [vmem:[#allocation3] sm:$0xff]
    %v965 = vld [vmem:[#allocation3 + $0x8] sm:$0xff]
    %v966 = vld [vmem:[#allocation3 + $0x10] sm:$0xff]
    %v967 = vld [vmem:[#allocation3 + $0x18] sm:$0xff]
    %v968 = vld [vmem:[#allocation3 + $0x20] sm:$0xff]
    %v969 = vld [vmem:[#allocation3 + $0x28] sm:$0xff]
    %v970 = vld [vmem:[#allocation3 + $0x30] sm:$0xff]
    %v971 = vld [vmem:[#allocation3 + $0x38] sm:$0xff]
    %v972 = vld [vmem:[#allocation3 + $0x40] sm:$0xff]
    %v973 = vld [vmem:[#allocation3 + $0x48] sm:$0xff]
    %v974 = vld [vmem:[#allocation3 + $0x50] sm:$0xff]
    %v975 = vld [vmem:[#allocation3 + $0x58] sm:$0xff]
    %v976 = vld [vmem:[#allocation3 + $0x60] sm:$0xff]
    %v977 = vld [vmem:[#allocation3 + $0x68] sm:$0xff]
    %v978 = vld [vmem:[#allocation3 + $0x70] sm:$0xff]
    %v979 = vld [vmem:[#allocation3 + $0x78] sm:$0xff]
    %980 = vmatprep.subr.mxu0 0.0
    %981 = vmatpush1.msra.mxu0 %v964
    %982 = vmatprep.subr.mxu0 0.0
    %983 = vmatpush1.msra.mxu0 %v965
    %984 = vmatprep.subr.mxu0 0.0
    %985 = vmatpush1.msra.mxu0 %v966
    %986 = vmatprep.subr.mxu0 0.0
    %987 = vmatpush1.msra.mxu0 %v967
    %988 = vmatprep.subr.mxu0 0.0
    %989 = vmatpush1.msra.mxu0 %v968
    %990 = vmatprep.subr.mxu0 0.0
    %991 = vmatpush1.msra.mxu0 %v969
    %992 = vmatprep.subr.mxu0 0.0
    %993 = vmatpush1.msra.mxu0 %v970
    %994 = vmatprep.subr.mxu0 0.0
    %995 = vmatpush1.msra.mxu0 %v971
    %996 = vmatprep.subr.mxu0 0.0
    %997 = vmatpush1.msra.mxu0 %v972
    %998 = vmatprep.subr.mxu0 0.0
    %999 = vmatpush1.msra.mxu0 %v973
    %1000 = vmatprep.subr.mxu0 0.0
    %1001 = vmatpush1.msra.mxu0 %v974
    %1002 = vmatprep.subr.mxu0 0.0
    %1003 = vmatpush1.msra.mxu0 %v975
    %1004 = vmatprep.subr.mxu0 0.0
    %1005 = vmatpush1.msra.mxu0 %v976
    %1006 = vmatprep.subr.mxu0 0.0
    %1007 = vmatpush1.msra.mxu0 %v977
    %1008 = vmatprep.subr.mxu0 0.0
    %1009 = vmatpush1.msra.mxu0 %v978
    %1010 = vmatprep.subr.mxu0 0.0
    %1011 = vmatpush1.msra.mxu0 %v979
    %1012 = vmatprep.subr.mxu0 0.0
    %1013 = vmatpush1.msra.mxu0 0.0
    %1014 = vmatprep.subr.mxu0 0.0
    %1015 = vmatpush1.msra.mxu0 0.0
    %1016 = vmatprep.subr.mxu0 0.0
    %1017 = vmatpush1.msra.mxu0 0.0
    %1018 = vmatprep.subr.mxu0 0.0
    %1019 = vmatpush1.msra.mxu0 0.0
    %1020 = vmatprep.subr.mxu0 0.0
    %1021 = vmatpush1.msra.mxu0 0.0
    %1022 = vmatprep.subr.mxu0 0.0
    %1023 = vmatpush1.msra.mxu0 0.0
    %1024 = vmatprep.subr.mxu0 0.0
    %1025 = vmatpush1.msra.mxu0 0.0
    %1026 = vmatprep.subr.mxu0 0.0
    %1027 = vmatpush1.msra.mxu0 0.0
    %1028 = vmatprep.subr.mxu0 0.0
    %1029 = vmatpush1.msra.mxu0 0.0
    %1030 = vmatprep.subr.mxu0 0.0
    %1031 = vmatpush1.msra.mxu0 0.0
    %1032 = vmatprep.subr.mxu0 0.0
    %1033 = vmatpush1.msra.mxu0 0.0
    %1034 = vmatprep.subr.mxu0 0.0
    %1035 = vmatpush1.msra.mxu0 0.0
    %1036 = vmatprep.subr.mxu0 0.0
    %1037 = vmatpush1.msra.mxu0 0.0
    %1038 = vmatprep.subr.mxu0 0.0
    %1039 = vmatpush1.msra.mxu0 0.0
    %1040 = vmatprep.subr.mxu0 0.0
    %1041 = vmatpush1.msra.mxu0 0.0
    %1042 = vmatprep.subr.mxu0 0.0
    %1043 = vmatpush1.msra.mxu0 0.0
    %1044 = vmatprep.mubr.f32.mxu0 0.0
    %1045 = vmatmul.mubr.f32.gmra.mrb[0].mxu0 %v963
    %v1046 = vpop.f32.mrb[0].mxu0
    %v1047 = vadd.f32 %v76, %v1046
    %v1048 = vpop.f32.mrb[0].mxu0
    %1049 = vdwg.mxu0
    %v1050 = vld [vmem:[#allocation6] sm:$0xff]
    %v1051 = vld [vmem:[#allocation6 + $0x8] sm:$0xff]
    %v1052 = vld [vmem:[#allocation6 + $0x10] sm:$0xff]
    %v1053 = vld [vmem:[#allocation6 + $0x18] sm:$0xff]
    %v1054 = vld [vmem:[#allocation6 + $0x20] sm:$0xff]
    %v1055 = vld [vmem:[#allocation6 + $0x28] sm:$0xff]
    %v1056 = vld [vmem:[#allocation6 + $0x30] sm:$0xff]
    %v1057 = vld [vmem:[#allocation6 + $0x38] sm:$0xff]
    %v1058 = vld [vmem:[#allocation6 + $0x40] sm:$0xff]
    %v1059 = vld [vmem:[#allocation6 + $0x48] sm:$0xff]
    %v1060 = vld [vmem:[#allocation6 + $0x50] sm:$0xff]
    %v1061 = vld [vmem:[#allocation6 + $0x58] sm:$0xff]
    %v1062 = vld [vmem:[#allocation6 + $0x60] sm:$0xff]
    %v1063 = vld [vmem:[#allocation6 + $0x68] sm:$0xff]
    %v1064 = vld [vmem:[#allocation6 + $0x70] sm:$0xff]
    %v1065 = vld [vmem:[#allocation6 + $0x78] sm:$0xff]
    %1066 = vmatprep.subr.mxu0 0.0
    %1067 = vmatpush1.msra.mxu0 %v1050
    %1068 = vmatprep.subr.mxu0 0.0
    %1069 = vmatpush1.msra.mxu0 %v1051
    %1070 = vmatprep.subr.mxu0 0.0
    %1071 = vmatpush1.msra.mxu0 %v1052
    %1072 = vmatprep.subr.mxu0 0.0
    %1073 = vmatpush1.msra.mxu0 %v1053
    %1074 = vmatprep.subr.mxu0 0.0
    %1075 = vmatpush1.msra.mxu0 %v1054
    %1076 = vmatprep.subr.mxu0 0.0
    %1077 = vmatpush1.msra.mxu0 %v1055
    %1078 = vmatprep.subr.mxu0 0.0
    %1079 = vmatpush1.msra.mxu0 %v1056
    %1080 = vmatprep.subr.mxu0 0.0
    %1081 = vmatpush1.msra.mxu0 %v1057
    %1082 = vmatprep.subr.mxu0 0.0
    %1083 = vmatpush1.msra.mxu0 %v1058
    %1084 = vmatprep.subr.mxu0 0.0
    %1085 = vmatpush1.msra.mxu0 %v1059
    %1086 = vmatprep.subr.mxu0 0.0
    %1087 = vmatpush1.msra.mxu0 %v1060
    %1088 = vmatprep.subr.mxu0 0.0
    %1089 = vmatpush1.msra.mxu0 %v1061
    %1090 = vmatprep.subr.mxu0 0.0
    %1091 = vmatpush1.msra.mxu0 %v1062
    %1092 = vmatprep.subr.mxu0 0.0
    %1093 = vmatpush1.msra.mxu0 %v1063
    %1094 = vmatprep.subr.mxu0 0.0
    %1095 = vmatpush1.msra.mxu0 %v1064
    %1096 = vmatprep.subr.mxu0 0.0
    %1097 = vmatpush1.msra.mxu0 %v1065
    %1098 = vmatprep.subr.mxu0 0.0
    %1099 = vmatpush1.msra.mxu0 0.0
    %1100 = vmatprep.subr.mxu0 0.0
    %1101 = vmatpush1.msra.mxu0 0.0
    %1102 = vmatprep.subr.mxu0 0.0
    %1103 = vmatpush1.msra.mxu0 0.0
    %1104 = vmatprep.subr.mxu0 0.0
    %1105 = vmatpush1.msra.mxu0 0.0
    %1106 = vmatprep.subr.mxu0 0.0
    %1107 = vmatpush1.msra.mxu0 0.0
    %1108 = vmatprep.subr.mxu0 0.0
    %1109 = vmatpush1.msra.mxu0 0.0
    %1110 = vmatprep.subr.mxu0 0.0
    %1111 = vmatpush1.msra.mxu0 0.0
    %1112 = vmatprep.subr.mxu0 0.0
    %1113 = vmatpush1.msra.mxu0 0.0
    %1114 = vmatprep.subr.mxu0 0.0
    %1115 = vmatpush1.msra.mxu0 0.0
    %1116 = vmatprep.subr.mxu0 0.0
    %1117 = vmatpush1.msra.mxu0 0.0
    %1118 = vmatprep.subr.mxu0 0.0
    %1119 = vmatpush1.msra.mxu0 0.0
    %1120 = vmatprep.subr.mxu0 0.0
    %1121 = vmatpush1.msra.mxu0 0.0
    %1122 = vmatprep.subr.mxu0 0.0
    %1123 = vmatpush1.msra.mxu0 0.0
    %1124 = vmatprep.subr.mxu0 0.0
    %1125 = vmatpush1.msra.mxu0 0.0
    %1126 = vmatprep.subr.mxu0 0.0
    %1127 = vmatpush1.msra.mxu0 0.0
    %1128 = vmatprep.subr.mxu0 0.0
    %1129 = vmatpush1.msra.mxu0 0.0
    %1130 = vmatprep.mubr.f32.mxu0 0.0
    %1131 = vmatmul.mubr.f32.gmra.mrb[0].mxu0 0.0
    %v1132 = vpop.f32.mrb[0].mxu0
    %v1133 = vadd.f32 %v50, %v1132
    %v1134 = vpop.f32.mrb[0].mxu0
    %1135 = vdwg.mxu0
    %v1136 = vadd.f32 %v1047, %v1133
    %v1137 = vxor.u32 %v1136, 2147483648
    %v1138 = vmul.f32 %v1137, 1.442695
    %v1139 = vpow.pop %v1138
    %v1140 = vadd.f32 %v1139, 1.0
    %v1141 = vrcp.pop %v1140
    %v1142 = vmul.f32 1.0, %v1141
    %1143 = vrot.lane.b32.xlu0 %v1142, 64
    %v1144 = vpop.permute.xlu0 %1143
    %v1145 = vmul.f32 %v1144, %v1133
    %v1146 = vadd.f32 %v1047, %v1145
    %v1147 = vtanh.pop %v1146
    %1148 = vrot.lane.b32.xlu0 %v1147, 64
    %v1149 = vpop.permute.xlu0 %1148
    %1150 = vrot.lane.b32.xlu0 %v1142, 96
    %v1151 = vpop.permute.xlu0 %1150
    %v1152 = vsub.f32 0.0, %v1149
    %v1153 = vmul.f32 %v1151, %v1152
    %v1154 = vadd.f32 %v1149, %v1153
    %1155 = vmatprep.subr.mxu0 0.0
    %1156 = vmatpush1.msra.mxu0 %v1050
    %1157 = vmatprep.subr.mxu0 0.0
    %1158 = vmatpush1.msra.mxu0 %v1051
    %1159 = vmatprep.subr.mxu0 0.0
    %1160 = vmatpush1.msra.mxu0 %v1052
    %1161 = vmatprep.subr.mxu0 0.0
    %1162 = vmatpush1.msra.mxu0 %v1053
    %1163 = vmatprep.subr.mxu0 0.0
    %1164 = vmatpush1.msra.mxu0 %v1054
    %1165 = vmatprep.subr.mxu0 0.0
    %1166 = vmatpush1.msra.mxu0 %v1055
    %1167 = vmatprep.subr.mxu0 0.0
    %1168 = vmatpush1.msra.mxu0 %v1056
    %1169 = vmatprep.subr.mxu0 0.0
    %1170 = vmatpush1.msra.mxu0 %v1057
    %1171 = vmatprep.subr.mxu0 0.0
    %1172 = vmatpush1.msra.mxu0 %v1058
    %1173 = vmatprep.subr.mxu0 0.0
    %1174 = vmatpush1.msra.mxu0 %v1059
    %1175 = vmatprep.subr.mxu0 0.0
    %1176 = vmatpush1.msra.mxu0 %v1060
    %1177 = vmatprep.subr.mxu0 0.0
    %1178 = vmatpush1.msra.mxu0 %v1061
    %1179 = vmatprep.subr.mxu0 0.0
    %1180 = vmatpush1.msra.mxu0 %v1062
    %1181 = vmatprep.subr.mxu0 0.0
    %1182 = vmatpush1.msra.mxu0 %v1063
    %1183 = vmatprep.subr.mxu0 0.0
    %1184 = vmatpush1.msra.mxu0 %v1064
    %1185 = vmatprep.subr.mxu0 0.0
    %1186 = vmatpush1.msra.mxu0 %v1065
    %1187 = vmatprep.subr.mxu0 0.0
    %1188 = vmatpush1.msra.mxu0 0.0
    %1189 = vmatprep.subr.mxu0 0.0
    %1190 = vmatpush1.msra.mxu0 0.0
    %1191 = vmatprep.subr.mxu0 0.0
    %1192 = vmatpush1.msra.mxu0 0.0
    %1193 = vmatprep.subr.mxu0 0.0
    %1194 = vmatpush1.msra.mxu0 0.0
    %1195 = vmatprep.subr.mxu0 0.0
    %1196 = vmatpush1.msra.mxu0 0.0
    %1197 = vmatprep.subr.mxu0 0.0
    %1198 = vmatpush1.msra.mxu0 0.0
    %1199 = vmatprep.subr.mxu0 0.0
    %1200 = vmatpush1.msra.mxu0 0.0
    %1201 = vmatprep.subr.mxu0 0.0
    %1202 = vmatpush1.msra.mxu0 0.0
    %1203 = vmatprep.subr.mxu0 0.0
    %1204 = vmatpush1.msra.mxu0 0.0
    %1205 = vmatprep.subr.mxu0 0.0
    %1206 = vmatpush1.msra.mxu0 0.0
    %1207 = vmatprep.subr.mxu0 0.0
    %1208 = vmatpush1.msra.mxu0 0.0
    %1209 = vmatprep.subr.mxu0 0.0
    %1210 = vmatpush1.msra.mxu0 0.0
    %1211 = vmatprep.subr.mxu0 0.0
    %1212 = vmatpush1.msra.mxu0 0.0
    %1213 = vmatprep.subr.mxu0 0.0
    %1214 = vmatpush1.msra.mxu0 0.0
    %1215 = vmatprep.subr.mxu0 0.0
    %1216 = vmatpush1.msra.mxu0 0.0
    %1217 = vmatprep.subr.mxu0 0.0
    %1218 = vmatpush1.msra.mxu0 0.0
    %1219 = vmatprep.mubr.f32.mxu0 0.0
    %1220 = vmatmul.mubr.f32.gmra.mrb[0].mxu0 %v1154
    %v1221 = vpop.f32.mrb[0].mxu0
    %v1222 = vadd.f32 %v50, %v1221
    %v1223 = vpop.f32.mrb[0].mxu0
    %1224 = vdwg.mxu0
    %v1226 = vrot.slane %v1222, 7
    %v1228 = vadd.f32 %v1047, %v1226
    %v1229 = vxor.u32 %v1228, 2147483648
    %v1230 = vmul.f32 %v1229, 1.442695
    %v1231 = vpow.pop %v1230
    %v1232 = vadd.f32 %v1231, 1.0
    %v1233 = vrcp.pop %v1232
    %v1234 = vmul.f32 1.0, %v1233
    %v1236 = vrot.slane %v1234, 1
    %1238 = vrot.lane.b32.xlu0 %v1236, 64
    %v1239 = vpop.permute.xlu0 %1238
    %v1240 = vmul.f32 %v1239, %v1222
    %v1242 = vrot.slane %v1240, 7
    %v1244 = vadd.f32 %v1047, %v1242
    %v1245 = vtanh.pop %v1244
    %v1247 = vrot.slane %v1245, 1
    %1249 = vrot.lane.b32.xlu0 %v1247, 64
    %v1250 = vpop.permute.xlu0 %1249
    %1251 = vrot.lane.b32.xlu0 %v1236, 96
    %v1252 = vpop.permute.xlu0 %1251
    %v1253 = vsub.f32 %v1154, %v1250
    %v1254 = vmul.f32 %v1252, %v1253
    %v1255 = vadd.f32 %v1250, %v1254
    %1256 = vmatprep.subr.mxu0 0.0
    %1257 = vmatpush1.msra.mxu0 %v1050
    %1258 = vmatprep.subr.mxu0 0.0
    %1259 = vmatpush1.msra.mxu0 %v1051
    %1260 = vmatprep.subr.mxu0 0.0
    %1261 = vmatpush1.msra.mxu0 %v1052
    %1262 = vmatprep.subr.mxu0 0.0
    %1263 = vmatpush1.msra.mxu0 %v1053
    %1264 = vmatprep.subr.mxu0 0.0
    %1265 = vmatpush1.msra.mxu0 %v1054
    %1266 = vmatprep.subr.mxu0 0.0
    %1267 = vmatpush1.msra.mxu0 %v1055
    %1268 = vmatprep.subr.mxu0 0.0
    %1269 = vmatpush1.msra.mxu0 %v1056
    %1270 = vmatprep.subr.mxu0 0.0
    %1271 = vmatpush1.msra.mxu0 %v1057
    %1272 = vmatprep.subr.mxu0 0.0
    %1273 = vmatpush1.msra.mxu0 %v1058
    %1274 = vmatprep.subr.mxu0 0.0
    %1275 = vmatpush1.msra.mxu0 %v1059
    %1276 = vmatprep.subr.mxu0 0.0
    %1277 = vmatpush1.msra.mxu0 %v1060
    %1278 = vmatprep.subr.mxu0 0.0
    %1279 = vmatpush1.msra.mxu0 %v1061
    %1280 = vmatprep.subr.mxu0 0.0
    %1281 = vmatpush1.msra.mxu0 %v1062
    %1282 = vmatprep.subr.mxu0 0.0
    %1283 = vmatpush1.msra.mxu0 %v1063
    %1284 = vmatprep.subr.mxu0 0.0
    %1285 = vmatpush1.msra.mxu0 %v1064
    %1286 = vmatprep.subr.mxu0 0.0
    %1287 = vmatpush1.msra.mxu0 %v1065
    %1288 = vmatprep.subr.mxu0 0.0
    %1289 = vmatpush1.msra.mxu0 0.0
    %1290 = vmatprep.subr.mxu0 0.0
    %1291 = vmatpush1.msra.mxu0 0.0
    %1292 = vmatprep.subr.mxu0 0.0
    %1293 = vmatpush1.msra.mxu0 0.0
    %1294 = vmatprep.subr.mxu0 0.0
    %1295 = vmatpush1.msra.mxu0 0.0
    %1296 = vmatprep.subr.mxu0 0.0
    %1297 = vmatpush1.msra.mxu0 0.0
    %1298 = vmatprep.subr.mxu0 0.0
    %1299 = vmatpush1.msra.mxu0 0.0
    %1300 = vmatprep.subr.mxu0 0.0
    %1301 = vmatpush1.msra.mxu0 0.0
    %1302 = vmatprep.subr.mxu0 0.0
    %1303 = vmatpush1.msra.mxu0 0.0
    %1304 = vmatprep.subr.mxu0 0.0
    %1305 = vmatpush1.msra.mxu0 0.0
    %1306 = vmatprep.subr.mxu0 0.0
    %1307 = vmatpush1.msra.mxu0 0.0
    %1308 = vmatprep.subr.mxu0 0.0
    %1309 = vmatpush1.msra.mxu0 0.0
    %1310 = vmatprep.subr.mxu0 0.0
    %1311 = vmatpush1.msra.mxu0 0.0
    %1312 = vmatprep.subr.mxu0 0.0
    %1313 = vmatpush1.msra.mxu0 0.0
    %1314 = vmatprep.subr.mxu0 0.0
    %1315 = vmatpush1.msra.mxu0 0.0
    %1316 = vmatprep.subr.mxu0 0.0
    %1317 = vmatpush1.msra.mxu0 0.0
    %1318 = vmatprep.subr.mxu0 0.0
    %1319 = vmatpush1.msra.mxu0 0.0
    %1320 = vmatprep.mubr.f32.mxu0 0.0
    %1321 = vmatmul.mubr.f32.gmra.mrb[0].mxu0 %v1255
    %v1322 = vpop.f32.mrb[0].mxu0
    %v1323 = vadd.f32 %v50, %v1322
    %v1324 = vpop.f32.mrb[0].mxu0
    %1325 = vdwg.mxu0
    %v1327 = vrot.slane %v1323, 6
    %v1329 = vadd.f32 %v1047, %v1327
    %v1330 = vxor.u32 %v1329, 2147483648
    %v1331 = vmul.f32 %v1330, 1.442695
    %v1332 = vpow.pop %v1331
    %v1333 = vadd.f32 %v1332, 1.0
    %v1334 = vrcp.pop %v1333
    %v1335 = vmul.f32 1.0, %v1334
    %v1337 = vrot.slane %v1335, 2
    %1339 = vrot.lane.b32.xlu0 %v1337, 64
    %v1340 = vpop.permute.xlu0 %1339
    %v1341 = vmul.f32 %v1340, %v1323
    %v1343 = vrot.slane %v1341, 6
    %v1345 = vadd.f32 %v1047, %v1343
    %v1346 = vtanh.pop %v1345
    %v1348 = vrot.slane %v1346, 2
    %1350 = vrot.lane.b32.xlu0 %v1348, 64
    %v1351 = vpop.permute.xlu0 %1350
    %1352 = vrot.lane.b32.xlu0 %v1337, 96
    %v1353 = vpop.permute.xlu0 %1352
    %v1354 = vsub.f32 %v1255, %v1351
    %v1355 = vmul.f32 %v1353, %v1354
    %v1356 = vadd.f32 %v1351, %v1355
    %1357 = vmatprep.subr.mxu0 0.0
    %1358 = vmatpush1.msra.mxu0 %v1050
    %1359 = vmatprep.subr.mxu0 0.0
    %1360 = vmatpush1.msra.mxu0 %v1051
    %1361 = vmatprep.subr.mxu0 0.0
    %1362 = vmatpush1.msra.mxu0 %v1052
    %1363 = vmatprep.subr.mxu0 0.0
    %1364 = vmatpush1.msra.mxu0 %v1053
    %1365 = vmatprep.subr.mxu0 0.0
    %1366 = vmatpush1.msra.mxu0 %v1054
    %1367 = vmatprep.subr.mxu0 0.0
    %1368 = vmatpush1.msra.mxu0 %v1055
    %1369 = vmatprep.subr.mxu0 0.0
    %1370 = vmatpush1.msra.mxu0 %v1056
    %1371 = vmatprep.subr.mxu0 0.0
    %1372 = vmatpush1.msra.mxu0 %v1057
    %1373 = vmatprep.subr.mxu0 0.0
    %1374 = vmatpush1.msra.mxu0 %v1058
    %1375 = vmatprep.subr.mxu0 0.0
    %1376 = vmatpush1.msra.mxu0 %v1059
    %1377 = vmatprep.subr.mxu0 0.0
    %1378 = vmatpush1.msra.mxu0 %v1060
    %1379 = vmatprep.subr.mxu0 0.0
    %1380 = vmatpush1.msra.mxu0 %v1061
    %1381 = vmatprep.subr.mxu0 0.0
    %1382 = vmatpush1.msra.mxu0 %v1062
    %1383 = vmatprep.subr.mxu0 0.0
    %1384 = vmatpush1.msra.mxu0 %v1063
    %1385 = vmatprep.subr.mxu0 0.0
    %1386 = vmatpush1.msra.mxu0 %v1064
    %1387 = vmatprep.subr.mxu0 0.0
    %1388 = vmatpush1.msra.mxu0 %v1065
    %1389 = vmatprep.subr.mxu0 0.0
    %1390 = vmatpush1.msra.mxu0 0.0
    %1391 = vmatprep.subr.mxu0 0.0
    %1392 = vmatpush1.msra.mxu0 0.0
    %1393 = vmatprep.subr.mxu0 0.0
    %1394 = vmatpush1.msra.mxu0 0.0
    %1395 = vmatprep.subr.mxu0 0.0
    %1396 = vmatpush1.msra.mxu0 0.0
    %1397 = vmatprep.subr.mxu0 0.0
    %1398 = vmatpush1.msra.mxu0 0.0
    %1399 = vmatprep.subr.mxu0 0.0
    %1400 = vmatpush1.msra.mxu0 0.0
    %1401 = vmatprep.subr.mxu0 0.0
    %1402 = vmatpush1.msra.mxu0 0.0
    %1403 = vmatprep.subr.mxu0 0.0
    %1404 = vmatpush1.msra.mxu0 0.0
    %1405 = vmatprep.subr.mxu0 0.0
    %1406 = vmatpush1.msra.mxu0 0.0
    %1407 = vmatprep.subr.mxu0 0.0
    %1408 = vmatpush1.msra.mxu0 0.0
    %1409 = vmatprep.subr.mxu0 0.0
    %1410 = vmatpush1.msra.mxu0 0.0
    %1411 = vmatprep.subr.mxu0 0.0
    %1412 = vmatpush1.msra.mxu0 0.0
    %1413 = vmatprep.subr.mxu0 0.0
    %1414 = vmatpush1.msra.mxu0 0.0
    %1415 = vmatprep.subr.mxu0 0.0
    %1416 = vmatpush1.msra.mxu0 0.0
    %1417 = vmatprep.subr.mxu0 0.0
    %1418 = vmatpush1.msra.mxu0 0.0
    %1419 = vmatprep.subr.mxu0 0.0
    %1420 = vmatpush1.msra.mxu0 0.0
    %1421 = vmatprep.mubr.f32.mxu0 0.0
    %1422 = vmatmul.mubr.f32.gmra.mrb[0].mxu0 %v1356
    %v1423 = vpop.f32.mrb[0].mxu0
    %v1424 = vadd.f32 %v50, %v1423
    %v1425 = vpop.f32.mrb[0].mxu0
    %1426 = vdwg.mxu0
    %v1428 = vrot.slane %v1424, 5
    %v1430 = vadd.f32 %v1047, %v1428
    %v1431 = vxor.u32 %v1430, 2147483648
    %v1432 = vmul.f32 %v1431, 1.442695
    %v1433 = vpow.pop %v1432
    %v1434 = vadd.f32 %v1433, 1.0
    %v1435 = vrcp.pop %v1434
    %v1436 = vmul.f32 1.0, %v1435
    %v1438 = vrot.slane %v1436, 3
    %1440 = vrot.lane.b32.xlu0 %v1438, 64
    %v1441 = vpop.permute.xlu0 %1440
    %v1442 = vmul.f32 %v1441, %v1424
    %v1444 = vrot.slane %v1442, 5
    %v1446 = vadd.f32 %v1047, %v1444
    %v1447 = vtanh.pop %v1446
    %v1449 = vrot.slane %v1447, 3
    %1451 = vrot.lane.b32.xlu0 %v1449, 64
    %v1452 = vpop.permute.xlu0 %1451
    %1453 = vrot.lane.b32.xlu0 %v1438, 96
    %v1454 = vpop.permute.xlu0 %1453
    %v1455 = vsub.f32 %v1356, %v1452
    %v1456 = vmul.f32 %v1454, %v1455
    %v1457 = vadd.f32 %v1452, %v1456
    %1458 = vmatprep.subr.mxu0 0.0
    %1459 = vmatpush1.msra.mxu0 %v1050
    %1460 = vmatprep.subr.mxu0 0.0
    %1461 = vmatpush1.msra.mxu0 %v1051
    %1462 = vmatprep.subr.mxu0 0.0
    %1463 = vmatpush1.msra.mxu0 %v1052
    %1464 = vmatprep.subr.mxu0 0.0
    %1465 = vmatpush1.msra.mxu0 %v1053
    %1466 = vmatprep.subr.mxu0 0.0
    %1467 = vmatpush1.msra.mxu0 %v1054
    %1468 = vmatprep.subr.mxu0 0.0
    %1469 = vmatpush1.msra.mxu0 %v1055
    %1470 = vmatprep.subr.mxu0 0.0
    %1471 = vmatpush1.msra.mxu0 %v1056
    %1472 = vmatprep.subr.mxu0 0.0
    %1473 = vmatpush1.msra.mxu0 %v1057
    %1474 = vmatprep.subr.mxu0 0.0
    %1475 = vmatpush1.msra.mxu0 %v1058
    %1476 = vmatprep.subr.mxu0 0.0
    %1477 = vmatpush1.msra.mxu0 %v1059
    %1478 = vmatprep.subr.mxu0 0.0
    %1479 = vmatpush1.msra.mxu0 %v1060
    %1480 = vmatprep.subr.mxu0 0.0
    %1481 = vmatpush1.msra.mxu0 %v1061
    %1482 = vmatprep.subr.mxu0 0.0
    %1483 = vmatpush1.msra.mxu0 %v1062
    %1484 = vmatprep.subr.mxu0 0.0
    %1485 = vmatpush1.msra.mxu0 %v1063
    %1486 = vmatprep.subr.mxu0 0.0
    %1487 = vmatpush1.msra.mxu0 %v1064
    %1488 = vmatprep.subr.mxu0 0.0
    %1489 = vmatpush1.msra.mxu0 %v1065
    %1490 = vmatprep.subr.mxu0 0.0
    %1491 = vmatpush1.msra.mxu0 0.0
    %1492 = vmatprep.subr.mxu0 0.0
    %1493 = vmatpush1.msra.mxu0 0.0
    %1494 = vmatprep.subr.mxu0 0.0
    %1495 = vmatpush1.msra.mxu0 0.0
    %1496 = vmatprep.subr.mxu0 0.0
    %1497 = vmatpush1.msra.mxu0 0.0
    %1498 = vmatprep.subr.mxu0 0.0
    %1499 = vmatpush1.msra.mxu0 0.0
    %1500 = vmatprep.subr.mxu0 0.0
    %1501 = vmatpush1.msra.mxu0 0.0
    %1502 = vmatprep.subr.mxu0 0.0
    %1503 = vmatpush1.msra.mxu0 0.0
    %1504 = vmatprep.subr.mxu0 0.0
    %1505 = vmatpush1.msra.mxu0 0.0
    %1506 = vmatprep.subr.mxu0 0.0
    %1507 = vmatpush1.msra.mxu0 0.0
    %1508 = vmatprep.subr.mxu0 0.0
    %1509 = vmatpush1.msra.mxu0 0.0
    %1510 = vmatprep.subr.mxu0 0.0
    %1511 = vmatpush1.msra.mxu0 0.0
    %1512 = vmatprep.subr.mxu0 0.0
    %1513 = vmatpush1.msra.mxu0 0.0
    %1514 = vmatprep.subr.mxu0 0.0
    %1515 = vmatpush1.msra.mxu0 0.0
    %1516 = vmatprep.subr.mxu0 0.0
    %1517 = vmatpush1.msra.mxu0 0.0
    %1518 = vmatprep.subr.mxu0 0.0
    %1519 = vmatpush1.msra.mxu0 0.0
    %1520 = vmatprep.subr.mxu0 0.0
    %1521 = vmatpush1.msra.mxu0 0.0
    %1522 = vmatprep.mubr.f32.mxu0 0.0
    %1523 = vmatmul.mubr.f32.gmra.mrb[0].mxu0 %v1457
    %v1524 = vpop.f32.mrb[0].mxu0
    %v1525 = vadd.f32 %v50, %v1524
    %v1526 = vpop.f32.mrb[0].mxu0
    %1527 = vdwg.mxu0
    %v1529 = vrot.slane %v1525, 4
    %v1531 = vadd.f32 %v1047, %v1529
    %v1532 = vxor.u32 %v1531, 2147483648
    %v1533 = vmul.f32 %v1532, 1.442695
    %v1534 = vpow.pop %v1533
    %v1535 = vadd.f32 %v1534, 1.0
    %v1536 = vrcp.pop %v1535
    %v1537 = vmul.f32 1.0, %v1536
    %v1539 = vrot.slane %v1537, 4
    %1541 = vrot.lane.b32.xlu0 %v1539, 64
    %v1542 = vpop.permute.xlu0 %1541
    %v1543 = vmul.f32 %v1542, %v1525
    %v1545 = vrot.slane %v1543, 4
    %v1547 = vadd.f32 %v1047, %v1545
    %v1548 = vtanh.pop %v1547
    %v1550 = vrot.slane %v1548, 4
    %1552 = vrot.lane.b32.xlu0 %v1550, 64
    %v1553 = vpop.permute.xlu0 %1552
    %1554 = vrot.lane.b32.xlu0 %v1539, 96
    %v1555 = vpop.permute.xlu0 %1554
    %v1556 = vsub.f32 %v1457, %v1553
    %v1557 = vmul.f32 %v1555, %v1556
    %v1558 = vadd.f32 %v1553, %v1557
    %1559 = vmatprep.subr.mxu0 0.0
    %1560 = vmatpush1.msra.mxu0 %v1050
    %1561 = vmatprep.subr.mxu0 0.0
    %1562 = vmatpush1.msra.mxu0 %v1051
    %1563 = vmatprep.subr.mxu0 0.0
    %1564 = vmatpush1.msra.mxu0 %v1052
    %1565 = vmatprep.subr.mxu0 0.0
    %1566 = vmatpush1.msra.mxu0 %v1053
    %1567 = vmatprep.subr.mxu0 0.0
    %1568 = vmatpush1.msra.mxu0 %v1054
    %1569 = vmatprep.subr.mxu0 0.0
    %1570 = vmatpush1.msra.mxu0 %v1055
    %1571 = vmatprep.subr.mxu0 0.0
    %1572 = vmatpush1.msra.mxu0 %v1056
    %1573 = vmatprep.subr.mxu0 0.0
    %1574 = vmatpush1.msra.mxu0 %v1057
    %1575 = vmatprep.subr.mxu0 0.0
    %1576 = vmatpush1.msra.mxu0 %v1058
    %1577 = vmatprep.subr.mxu0 0.0
    %1578 = vmatpush1.msra.mxu0 %v1059
    %1579 = vmatprep.subr.mxu0 0.0
    %1580 = vmatpush1.msra.mxu0 %v1060
    %1581 = vmatprep.subr.mxu0 0.0
    %1582 = vmatpush1.msra.mxu0 %v1061
    %1583 = vmatprep.subr.mxu0 0.0
    %1584 = vmatpush1.msra.mxu0 %v1062
    %1585 = vmatprep.subr.mxu0 0.0
    %1586 = vmatpush1.msra.mxu0 %v1063
    %1587 = vmatprep.subr.mxu0 0.0
    %1588 = vmatpush1.msra.mxu0 %v1064
    %1589 = vmatprep.subr.mxu0 0.0
    %1590 = vmatpush1.msra.mxu0 %v1065
    %1591 = vmatprep.subr.mxu0 0.0
    %1592 = vmatpush1.msra.mxu0 0.0
    %1593 = vmatprep.subr.mxu0 0.0
    %1594 = vmatpush1.msra.mxu0 0.0
    %1595 = vmatprep.subr.mxu0 0.0
    %1596 = vmatpush1.msra.mxu0 0.0
    %1597 = vmatprep.subr.mxu0 0.0
    %1598 = vmatpush1.msra.mxu0 0.0
    %1599 = vmatprep.subr.mxu0 0.0
    %1600 = vmatpush1.msra.mxu0 0.0
    %1601 = vmatprep.subr.mxu0 0.0
    %1602 = vmatpush1.msra.mxu0 0.0
    %1603 = vmatprep.subr.mxu0 0.0
    %1604 = vmatpush1.msra.mxu0 0.0
    %1605 = vmatprep.subr.mxu0 0.0
    %1606 = vmatpush1.msra.mxu0 0.0
    %1607 = vmatprep.subr.mxu0 0.0
    %1608 = vmatpush1.msra.mxu0 0.0
    %1609 = vmatprep.subr.mxu0 0.0
    %1610 = vmatpush1.msra.mxu0 0.0
    %1611 = vmatprep.subr.mxu0 0.0
    %1612 = vmatpush1.msra.mxu0 0.0
    %1613 = vmatprep.subr.mxu0 0.0
    %1614 = vmatpush1.msra.mxu0 0.0
    %1615 = vmatprep.subr.mxu0 0.0
    %1616 = vmatpush1.msra.mxu0 0.0
    %1617 = vmatprep.subr.mxu0 0.0
    %1618 = vmatpush1.msra.mxu0 0.0
    %1619 = vmatprep.subr.mxu0 0.0
    %1620 = vmatpush1.msra.mxu0 0.0
    %1621 = vmatprep.subr.mxu0 0.0
    %1622 = vmatpush1.msra.mxu0 0.0
    %1623 = vmatprep.mubr.f32.mxu0 0.0
    %1624 = vmatmul.mubr.f32.gmra.mrb[0].mxu0 %v1558
    %v1625 = vpop.f32.mrb[0].mxu0
    %v1626 = vadd.f32 %v50, %v1625
    %v1627 = vpop.f32.mrb[0].mxu0
    %1628 = vdwg.mxu0
    %v1630 = vrot.slane %v1626, 3
    %v1632 = vadd.f32 %v1047, %v1630
    %v1633 = vxor.u32 %v1632, 2147483648
    %v1634 = vmul.f32 %v1633, 1.442695
    %v1635 = vpow.pop %v1634
    %v1636 = vadd.f32 %v1635, 1.0
    %v1637 = vrcp.pop %v1636
    %v1638 = vmul.f32 1.0, %v1637
    %v1640 = vrot.slane %v1638, 5
    %1642 = vrot.lane.b32.xlu0 %v1640, 64
    %v1643 = vpop.permute.xlu0 %1642
    %v1644 = vmul.f32 %v1643, %v1626
    %v1646 = vrot.slane %v1644, 3
    %v1648 = vadd.f32 %v1047, %v1646
    %v1649 = vtanh.pop %v1648
    %v1651 = vrot.slane %v1649, 5
    %1653 = vrot.lane.b32.xlu0 %v1651, 64
    %v1654 = vpop.permute.xlu0 %1653
    %1655 = vrot.lane.b32.xlu0 %v1640, 96
    %v1656 = vpop.permute.xlu0 %1655
    %v1657 = vsub.f32 %v1558, %v1654
    %v1658 = vmul.f32 %v1656, %v1657
    %v1659 = vadd.f32 %v1654, %v1658
    %1660 = vmatprep.subr.mxu0 0.0
    %1661 = vmatpush1.msra.mxu0 %v1050
    %1662 = vmatprep.subr.mxu0 0.0
    %1663 = vmatpush1.msra.mxu0 %v1051
    %1664 = vmatprep.subr.mxu0 0.0
    %1665 = vmatpush1.msra.mxu0 %v1052
    %1666 = vmatprep.subr.mxu0 0.0
    %1667 = vmatpush1.msra.mxu0 %v1053
    %1668 = vmatprep.subr.mxu0 0.0
    %1669 = vmatpush1.msra.mxu0 %v1054
    %1670 = vmatprep.subr.mxu0 0.0
    %1671 = vmatpush1.msra.mxu0 %v1055
    %1672 = vmatprep.subr.mxu0 0.0
    %1673 = vmatpush1.msra.mxu0 %v1056
    %1674 = vmatprep.subr.mxu0 0.0
    %1675 = vmatpush1.msra.mxu0 %v1057
    %1676 = vmatprep.subr.mxu0 0.0
    %1677 = vmatpush1.msra.mxu0 %v1058
    %1678 = vmatprep.subr.mxu0 0.0
    %1679 = vmatpush1.msra.mxu0 %v1059
    %1680 = vmatprep.subr.mxu0 0.0
    %1681 = vmatpush1.msra.mxu0 %v1060
    %1682 = vmatprep.subr.mxu0 0.0
    %1683 = vmatpush1.msra.mxu0 %v1061
    %1684 = vmatprep.subr.mxu0 0.0
    %1685 = vmatpush1.msra.mxu0 %v1062
    %1686 = vmatprep.subr.mxu0 0.0
    %1687 = vmatpush1.msra.mxu0 %v1063
    %1688 = vmatprep.subr.mxu0 0.0
    %1689 = vmatpush1.msra.mxu0 %v1064
    %1690 = vmatprep.subr.mxu0 0.0
    %1691 = vmatpush1.msra.mxu0 %v1065
    %1692 = vmatprep.subr.mxu0 0.0
    %1693 = vmatpush1.msra.mxu0 0.0
    %1694 = vmatprep.subr.mxu0 0.0
    %1695 = vmatpush1.msra.mxu0 0.0
    %1696 = vmatprep.subr.mxu0 0.0
    %1697 = vmatpush1.msra.mxu0 0.0
    %1698 = vmatprep.subr.mxu0 0.0
    %1699 = vmatpush1.msra.mxu0 0.0
    %1700 = vmatprep.subr.mxu0 0.0
    %1701 = vmatpush1.msra.mxu0 0.0
    %1702 = vmatprep.subr.mxu0 0.0
    %1703 = vmatpush1.msra.mxu0 0.0
    %1704 = vmatprep.subr.mxu0 0.0
    %1705 = vmatpush1.msra.mxu0 0.0
    %1706 = vmatprep.subr.mxu0 0.0
    %1707 = vmatpush1.msra.mxu0 0.0
    %1708 = vmatprep.subr.mxu0 0.0
    %1709 = vmatpush1.msra.mxu0 0.0
    %1710 = vmatprep.subr.mxu0 0.0
    %1711 = vmatpush1.msra.mxu0 0.0
    %1712 = vmatprep.subr.mxu0 0.0
    %1713 = vmatpush1.msra.mxu0 0.0
    %1714 = vmatprep.subr.mxu0 0.0
    %1715 = vmatpush1.msra.mxu0 0.0
    %1716 = vmatprep.subr.mxu0 0.0
    %1717 = vmatpush1.msra.mxu0 0.0
    %1718 = vmatprep.subr.mxu0 0.0
    %1719 = vmatpush1.msra.mxu0 0.0
    %1720 = vmatprep.subr.mxu0 0.0
    %1721 = vmatpush1.msra.mxu0 0.0
    %1722 = vmatprep.subr.mxu0 0.0
    %1723 = vmatpush1.msra.mxu0 0.0
    %1724 = vmatprep.mubr.f32.mxu0 0.0
    %1725 = vmatmul.mubr.f32.gmra.mrb[0].mxu0 %v1659
    %v1726 = vpop.f32.mrb[0].mxu0
    %v1727 = vadd.f32 %v50, %v1726
    %v1728 = vpop.f32.mrb[0].mxu0
    %1729 = vdwg.mxu0
    %v1731 = vrot.slane %v1727, 2
    %v1733 = vadd.f32 %v1047, %v1731
    %v1734 = vxor.u32 %v1733, 2147483648
    %v1735 = vmul.f32 %v1734, 1.442695
    %v1736 = vpow.pop %v1735
    %v1737 = vadd.f32 %v1736, 1.0
    %v1738 = vrcp.pop %v1737
    %v1739 = vmul.f32 1.0, %v1738
    %v1741 = vrot.slane %v1739, 6
    %1743 = vrot.lane.b32.xlu0 %v1741, 64
    %v1744 = vpop.permute.xlu0 %1743
    %v1745 = vmul.f32 %v1744, %v1727
    %v1747 = vrot.slane %v1745, 2
    %v1749 = vadd.f32 %v1047, %v1747
    %v1750 = vtanh.pop %v1749
    %v1752 = vrot.slane %v1750, 6
    %1754 = vrot.lane.b32.xlu0 %v1752, 64
    %v1755 = vpop.permute.xlu0 %1754
    %1756 = vrot.lane.b32.xlu0 %v1741, 96
    %v1757 = vpop.permute.xlu0 %1756
    %v1758 = vsub.f32 %v1659, %v1755
    %v1759 = vmul.f32 %v1757, %v1758
    %v1760 = vadd.f32 %v1755, %v1759
    %1761 = vmatprep.subr.mxu0 0.0
    %1762 = vmatpush1.msra.mxu0 %v1050
    %1763 = vmatprep.subr.mxu0 0.0
    %1764 = vmatpush1.msra.mxu0 %v1051
    %1765 = vmatprep.subr.mxu0 0.0
    %1766 = vmatpush1.msra.mxu0 %v1052
    %1767 = vmatprep.subr.mxu0 0.0
    %1768 = vmatpush1.msra.mxu0 %v1053
    %1769 = vmatprep.subr.mxu0 0.0
    %1770 = vmatpush1.msra.mxu0 %v1054
    %1771 = vmatprep.subr.mxu0 0.0
    %1772 = vmatpush1.msra.mxu0 %v1055
    %1773 = vmatprep.subr.mxu0 0.0
    %1774 = vmatpush1.msra.mxu0 %v1056
    %1775 = vmatprep.subr.mxu0 0.0
    %1776 = vmatpush1.msra.mxu0 %v1057
    %1777 = vmatprep.subr.mxu0 0.0
    %1778 = vmatpush1.msra.mxu0 %v1058
    %1779 = vmatprep.subr.mxu0 0.0
    %1780 = vmatpush1.msra.mxu0 %v1059
    %1781 = vmatprep.subr.mxu0 0.0
    %1782 = vmatpush1.msra.mxu0 %v1060
    %1783 = vmatprep.subr.mxu0 0.0
    %1784 = vmatpush1.msra.mxu0 %v1061
    %1785 = vmatprep.subr.mxu0 0.0
    %1786 = vmatpush1.msra.mxu0 %v1062
    %1787 = vmatprep.subr.mxu0 0.0
    %1788 = vmatpush1.msra.mxu0 %v1063
    %1789 = vmatprep.subr.mxu0 0.0
    %1790 = vmatpush1.msra.mxu0 %v1064
    %1791 = vmatprep.subr.mxu0 0.0
    %1792 = vmatpush1.msra.mxu0 %v1065
    %1793 = vmatprep.subr.mxu0 0.0
    %1794 = vmatpush1.msra.mxu0 0.0
    %1795 = vmatprep.subr.mxu0 0.0
    %1796 = vmatpush1.msra.mxu0 0.0
    %1797 = vmatprep.subr.mxu0 0.0
    %1798 = vmatpush1.msra.mxu0 0.0
    %1799 = vmatprep.subr.mxu0 0.0
    %1800 = vmatpush1.msra.mxu0 0.0
    %1801 = vmatprep.subr.mxu0 0.0
    %1802 = vmatpush1.msra.mxu0 0.0
    %1803 = vmatprep.subr.mxu0 0.0
    %1804 = vmatpush1.msra.mxu0 0.0
    %1805 = vmatprep.subr.mxu0 0.0
    %1806 = vmatpush1.msra.mxu0 0.0
    %1807 = vmatprep.subr.mxu0 0.0
    %1808 = vmatpush1.msra.mxu0 0.0
    %1809 = vmatprep.subr.mxu0 0.0
    %1810 = vmatpush1.msra.mxu0 0.0
    %1811 = vmatprep.subr.mxu0 0.0
    %1812 = vmatpush1.msra.mxu0 0.0
    %1813 = vmatprep.subr.mxu0 0.0
    %1814 = vmatpush1.msra.mxu0 0.0
    %1815 = vmatprep.subr.mxu0 0.0
    %1816 = vmatpush1.msra.mxu0 0.0
    %1817 = vmatprep.subr.mxu0 0.0
    %1818 = vmatpush1.msra.mxu0 0.0
    %1819 = vmatprep.subr.mxu0 0.0
    %1820 = vmatpush1.msra.mxu0 0.0
    %1821 = vmatprep.subr.mxu0 0.0
    %1822 = vmatpush1.msra.mxu0 0.0
    %1823 = vmatprep.subr.mxu0 0.0
    %1824 = vmatpush1.msra.mxu0 0.0
    %1825 = vmatprep.mubr.f32.mxu0 0.0
    %1826 = vmatmul.mubr.f32.gmra.mrb[0].mxu0 %v1760
    %v1827 = vpop.f32.mrb[0].mxu0
    %v1828 = vadd.f32 %v50, %v1827
    %v1829 = vpop.f32.mrb[0].mxu0
    %1830 = vdwg.mxu0
    %v1832 = vrot.slane %v1828, 1
    %v1834 = vadd.f32 %v1047, %v1832
    %v1835 = vxor.u32 %v1834, 2147483648
    %v1836 = vmul.f32 %v1835, 1.442695
    %v1837 = vpow.pop %v1836
    %v1838 = vadd.f32 %v1837, 1.0
    %v1839 = vrcp.pop %v1838
    %v1840 = vmul.f32 1.0, %v1839
    %v1842 = vrot.slane %v1840, 7
    %1844 = vrot.lane.b32.xlu0 %v1842, 64
    %v1845 = vpop.permute.xlu0 %1844
    %v1846 = vmul.f32 %v1845, %v1828
    %v1848 = vrot.slane %v1846, 1
    %v1850 = vadd.f32 %v1047, %v1848
    %v1851 = vtanh.pop %v1850
    %v1853 = vrot.slane %v1851, 7
    %1855 = vrot.lane.b32.xlu0 %v1853, 64
    %v1856 = vpop.permute.xlu0 %1855
    %1857 = vrot.lane.b32.xlu0 %v1842, 96
    %v1858 = vpop.permute.xlu0 %1857
    %v1859 = vsub.f32 %v1760, %v1856
    %v1860 = vmul.f32 %v1858, %v1859
    %v1861 = vadd.f32 %v1856, %v1860
    %v1863 = vrot.slane %v1861, 7
    %vm1865 = vcmask 1040384
    %v1866 = vsel %vm1865, %v959, %v1863
    %vm1867 = vcmask 254976
    %1868 = vst.msk [vmem:[#allocation8] sm:$0x3] %vm1867, %v1866
    // Predicated region
    $region30: #{encoder_forward.1} parent=1 // pred_check
      _
    $region31: #{encoder_forward.1} parent=1 // pred_check_branch
      %1870 = sbr.rel (0) target = $region33
    $region32: #{encoder_forward.1} parent=1 // pred_region
      %s1872 = ssub.s32 32, 32
      %1873 = vsyncadd [#allocation5], %s1872
      %s1875 = sshll.u32 [#allocation8], 4
      %s1876 = int_to_ptr.vmem [resolvable:$true] %s1875
      %1878 = dma.vmem_to_hbm [thread:$0]  %s1876, 32, %s5, [#allocation5]
    $region33: #{encoder_forward.1} parent=1 // pred_fallthru
      _
    // Predicated region
    $region34: #{encoder_forward.1} parent=1 // pred_check
      _
    $region35: #{encoder_forward.1} parent=1 // pred_check_branch
      %1880 = sbr.rel (0) target = $region37
    $region36: #{encoder_forward.1} parent=1 // pred_region
      %1881 = dma.done [#allocation5], 32
    $region37: #{encoder_forward.1} parent=1 // pred_fallthru
      _
    %1882 = vsyncpa [#allocation4], 1
    %1883 = vsyncpa [#allocation7], 1
    %1884 = vsyncpa [#allocation5], 1

</llo_original>
